<compile_context>
chip_gen: v6e
topology: v6e:2x2x1
jax: 0.10.0
libtpu: 0.0.40
codegen_flags: <defaults>
</compile_context>

<pallas_src>
import math

import jax
import jax.numpy as jnp
from jax import lax
from jax.experimental import pallas as pl
from jax.experimental.pallas import tpu as pltpu


def _make_kernel(*, c1, c2, cout, w_real, h_real, th, wp, nt, buf_len, tp_out,
                 lane_chunk, stacked):
    """Build the FFM kernel closed over static shape constants."""
    n_chunks = tp_out // lane_chunk
    # Buffer-local flat shift for tap (dy, dx): the row-aligned DMA window for
    # tile t starts at flat offset t*TH*Wp of the 2-top-pad-row slab.
    shifts = [(dy + 1) * wp + dx - 1 for dy in range(3) for dx in range(3)]
    inv_hw = 1.0 / float(h_real * w_real)
    inv_wp = 1.0 / float(wp)

    def kernel(x1_hbm, x2_hbm, wa_ref, wb_ref, pcol_ref, prow_ref, out_ref,
               xbuf1, xbuf2, sems, sum_ref):
        # x1_hbm/x2_hbm: (N, C, flat_len) bf16 HBM slabs (memory_space=ANY)
        # wa_ref/wb_ref: conv weights, (Cout, 9*C) [stacked] or (9, Cout, C)
        # pcol_ref:      (Cout, 3 + 2*Cout) f32   [bn_scale|bn_bias|b2|W1^T|W2]
        # prow_ref:      (1, Cout)          f32   b1
        # out_ref:       (NT, Cout, TH*Wp)  f32   resident per-batch block
        # xbuf1/xbuf2:   (2, C, buf_len)    bf16  double-buffered input tiles
        # sems:          DMA semaphores (2 slots x 2 inputs)
        # sum_ref:       (Cout, 1) f32      pooled-sum accumulator
        b = pl.program_id(0)
        t = pl.program_id(1)
        slot = t & 1

        def start_fetch(tt, sl):
            start = tt * tp_out                       # row-aligned flat offset
            pltpu.make_async_copy(x1_hbm.at[b, :, pl.ds(start, buf_len)],
                                  xbuf1.at[sl], sems.at[sl, 0]).start()
            pltpu.make_async_copy(x2_hbm.at[b, :, pl.ds(start, buf_len)],
                                  xbuf2.at[sl], sems.at[sl, 1]).start()

        def wait_fetch(sl):
            pltpu.make_async_copy(x1_hbm.at[0, :, pl.ds(0, buf_len)],
                                  xbuf1.at[sl], sems.at[sl, 0]).wait()
            pltpu.make_async_copy(x2_hbm.at[0, :, pl.ds(0, buf_len)],
                                  xbuf2.at[sl], sems.at[sl, 1]).wait()

        # Per-batch priming: the DMA/semaphore protocol never crosses a batch
        # boundary, so it is independent of how the parallel batch axis is
        # sharded across TensorCores (megacore-safe).
        @pl.when(t == 0)
        def _prime():
            sum_ref[...] = jnp.zeros_like(sum_ref)
            start_fetch(t, slot)                      # slot == 0 here

        @pl.when(t + 1 < nt)
        def _prefetch():
            start_fetch(t + 1, 1 - slot)

        wait_fetch(slot)

        scale = pcol_ref[:, 0:1]                      # folded BN scale (Cout,1)
        bias = pcol_ref[:, 1:2]                       # folded BN bias  (Cout,1)
        t_row0 = (t * th).astype(jnp.float32)

        def chunk_body(ci, carry):
            c0 = ci * lane_chunk
            if not isinstance(c0, int):
                c0 = pl.multiple_of(c0, 128)

            if stacked:
                # One matmul per input with K = 9*C (tap-major, channel-minor).
                xs1 = jnp.concatenate(
                    [xbuf1[slot, :, pl.ds(s + c0, lane_chunk)] for s in shifts],
                    axis=0)
                xs2 = jnp.concatenate(
                    [xbuf2[slot, :, pl.ds(s + c0, lane_chunk)] for s in shifts],
                    axis=0)
                acc = jnp.dot(wa_ref[...], xs1,
                              preferred_element_type=jnp.float32)
                acc = acc + jnp.dot(wb_ref[...], xs2,
                                    preferred_element_type=jnp.float32)
            else:
                # Per-tap accumulating dots (large Cin): accumulator stays
                # bounded to (Cout, lane_chunk).
                acc = jnp.zeros((cout, lane_chunk), jnp.float32)
                for k, s in enumerate(shifts):
                    acc = acc + jnp.dot(
                        wa_ref[k], xbuf1[slot, :, pl.ds(s + c0, lane_chunk)],
                        preferred_element_type=jnp.float32)
                    acc = acc + jnp.dot(
                        wb_ref[k], xbuf2[slot, :, pl.ds(s + c0, lane_chunk)],
                        preferred_element_type=jnp.float32)

            # Folded BatchNorm (inference stats) + ReLU.
            feat = jnp.maximum(acc * scale + bias, 0.0)
            out_ref[t, :, pl.ds(c0, lane_chunk)] = feat

            # Pooling mask built in-kernel: float index math (no int div/rem).
            p = (lax.broadcasted_iota(jnp.int32, (cout, lane_chunk), 1) + c0
                 ).astype(jnp.float32)
            row = jnp.floor(p * inv_wp)
            col = p - row * wp
            grow = row + t_row0
            valid = ((col >= 0.5) & (col <= w_real + 0.5)
                     & (grow <= h_real - 0.5))
            sum_ref[...] += (feat * valid.astype(jnp.float32)).sum(
                axis=1, keepdims=True)
            return carry

        if n_chunks == 1:
            chunk_body(0, 0)
        else:
            lax.fori_loop(0, n_chunks, chunk_body, 0)

        # Last spatial tile: finish the global-average pool, run the 1x1-conv
        # gate, and rescale the resident block by (gate + 1) tile-by-tile,
        # chunk-by-chunk (bounded vreg pressure, streaming stores).
        @pl.when(t == nt - 1)
        def _finalize():
            pooled = sum_ref[...] * inv_hw                    # (Cout, 1)
            w1t = pcol_ref[:, 3:3 + cout]                     # [c, o] = w1[o, c]
            w2 = pcol_ref[:, 3 + cout:3 + 2 * cout]           # [o, c] = w2[o, c]
            b1 = prow_ref[...]                                # (1, Cout)
            b2 = pcol_ref[:, 2:3]                             # (Cout, 1)
            z1 = jnp.maximum((w1t * pooled).sum(axis=0, keepdims=True) + b1, 0.0)
            z2 = jax.nn.sigmoid((w2 * z1).sum(axis=1, keepdims=True) + b2)
            g = 1.0 + z2                                      # (Cout, 1)

            def tile_body(tt, carry):
                def chunk_scale(cc, carry2):
                    cs = cc * lane_chunk
                    if not isinstance(cs, int):
                        cs = pl.multiple_of(cs, 128)
                    out_ref[tt, :, pl.ds(cs, lane_chunk)] = (
                        out_ref[tt, :, pl.ds(cs, lane_chunk)] * g)
                    return carry2
                if n_chunks == 1:
                    chunk_scale(0, 0)
                else:
                    lax.fori_loop(0, n_chunks, chunk_scale, 0)
                return carry
            lax.fori_loop(0, nt, tile_body, 0)

    return kernel


def feature_fusion_forward(input_1, input_2, params, *, tile_rows=None,
                           lane_chunk=512, stream_dtype=jnp.bfloat16,
                           conv_mode="auto", vmem_budget_bytes=40 << 20,
                           eps=1e-5):
    """FeatureFusionModule forward (BN in eval mode). NCHW in, NCHW out."""
    n, c1, h, w = input_1.shape
    n2, c2, h2, w2 = input_2.shape
    assert (n, h, w) == (n2, h2, w2)
    w_conv = params["w_conv"]                                # (Cout, Cin, 3, 3)
    cout, cin = w_conv.shape[0], w_conv.shape[1]
    assert cin == c1 + c2

    # ---- lane-aligned layout: Wp multiple of 16 => TH*Wp % 128 == 0 with a
    #      small row quantum TH_unit = 128 // gcd(Wp, 128) <= 8 ----
    wp = w + 2
    wp += (-wp) % 16
    th_unit = 128 // math.gcd(wp, 128)

    max_th = ((h + th_unit - 1) // th_unit) * th_unit
    if tile_rows is not None:
        max_th = min(max_th, max(th_unit, (tile_rows // th_unit) * th_unit))

    def footprint(th_):
        nt_ = -(-h // th_)
        resident = nt_ * cout * th_ * wp * 4                 # f32 resident out
        xbuf = 2 * (c1 + c2) * (th_ * wp + 4 * wp) * 2       # 2-slot bf16 tiles
        return resident + xbuf

    th = max_th
    while th > th_unit and footprint(th) > vmem_budget_bytes:
        th -= th_unit
    nt = -(-h // th)
    hpad = nt * th
    tp_out = th * wp
    buf_len = tp_out + 4 * wp                                # row-aligned window
    assert tp_out % 128 == 0

    lc = max(128, min(lane_chunk, tp_out))
    lc -= lc % 128
    while tp_out % lc:
        lc -= 128

    if conv_mode == "auto":
        stacked = 9 * cin <= 256
    else:
        stacked = (conv_mode == "stacked")

    # ---- activation slabs: one pad (2 top rows, 1 left col) per input, then a
    #      free reshape; the kernel DMAs overlapping halo windows itself ----
    def flat_slab(x):
        xp = jnp.pad(x.astype(stream_dtype),
                     ((0, 0), (0, 0), (2, hpad - h + 2), (1, wp - w - 1)))
        return xp.reshape(x.shape[0], x.shape[1], (hpad + 4) * wp)

    x1f = flat_slab(input_1)
    x2f = flat_slab(input_2)

    # ---- conv weights split per input (no concat of activations needed) ----
    wa4 = w_conv[:, :c1]                                     # (Cout, c1, 3, 3)
    wb4 = w_conv[:, c1:]
    if stacked:
        wa = jnp.transpose(wa4, (0, 2, 3, 1)).reshape(cout, 9 * c1)
        wb = jnp.transpose(wb4, (0, 2, 3, 1)).reshape(cout, 9 * c2)
        wa_spec = pl.BlockSpec((cout, 9 * c1), lambda b, t: (0, 0))
        wb_spec = pl.BlockSpec((cout, 9 * c2), lambda b, t: (0, 0))
    else:
        wa = jnp.transpose(wa4, (2, 3, 0, 1)).reshape(9, cout, c1)
        wb = jnp.transpose(wb4, (2, 3, 0, 1)).reshape(9, cout, c2)
        wa_spec = pl.BlockSpec((9, cout, c1), lambda b, t: (0, 0, 0))
        wb_spec = pl.BlockSpec((9, cout, c2), lambda b, t: (0, 0, 0))
    wa = wa.astype(stream_dtype)
    wb = wb.astype(stream_dtype)

    # ---- folded BatchNorm (inference) + packed 1x1-conv gate params ----
    bn_scale = params["gamma"] / jnp.sqrt(params["run_var"] + eps)
    bn_bias = params["beta"] - params["run_mean"] * bn_scale
    w1 = params["w1"][:, :, 0, 0]
    w2 = params["w2"][:, :, 0, 0]
    pcol = jnp.concatenate(
        [bn_scale[:, None], bn_bias[:, None], params["b2"][:, None], w1.T, w2],
        axis=1).astype(jnp.float32)                          # (Cout, 3+2*Cout)
    prow = params["b1"].reshape(1, cout).astype(jnp.float32)  # (1, Cout)

    kernel = _make_kernel(c1=c1, c2=c2, cout=cout, w_real=w, h_real=h, th=th,
                          wp=wp, nt=nt, buf_len=buf_len, tp_out=tp_out,
                          lane_chunk=lc, stacked=stacked)

    vmem_limit = int(min(max(footprint(th) + (4 << 20), 32 << 20), 96 << 20))

    out = pl.pallas_call(
        kernel,
        out_shape=jax.ShapeDtypeStruct((n, nt, cout, tp_out), jnp.float32),
        grid_spec=pltpu.PrefetchScalarGridSpec(
            num_scalar_prefetch=0,
            grid=(n, nt),                     # batch, then row tiles (reduction last)
            in_specs=[
                pl.BlockSpec(memory_space=pl.ANY),            # x1 slab (HBM)
                pl.BlockSpec(memory_space=pl.ANY),            # x2 slab (HBM)
                wa_spec,
                wb_spec,
                pl.BlockSpec((cout, 3 + 2 * cout), lambda b, t: (0, 0)),
                pl.BlockSpec((1, cout), lambda b, t: (0, 0)),
            ],
            out_specs=pl.BlockSpec((None, nt, cout, tp_out),
                                   lambda b, t: (b, 0, 0, 0)),
            scratch_shapes=[
                pltpu.VMEM((2, c1, buf_len), stream_dtype),   # x1 double buffer
                pltpu.VMEM((2, c2, buf_len), stream_dtype),   # x2 double buffer
                pltpu.SemaphoreType.DMA((2, 2)),              # (slot, input)
                pltpu.VMEM((cout, 1), jnp.float32),           # pooled sum
            ],
        ),
        compiler_params=pltpu.CompilerParams(
            dimension_semantics=("parallel", "arbitrary"),
            vmem_limit_bytes=vmem_limit),
    )(x1f, x2f, wa, wb, pcol, prow)

    # (N, NT, Cout, TH*Wp) -> NCHW: cheap rearrangement of the small
    # num_classes-channel output, then drop padding columns/rows.
    out = out.reshape(n, nt, cout, th, wp).transpose(0, 2, 1, 3, 4)
    out = out.reshape(n, cout, hpad, wp)
    return out[:, :, :h, 1:1 + w]


def reference_forward(input_1, input_2, params, eps=1e-5):
    """Pure-JAX reference matching the PyTorch module (BN in eval mode)."""
    x = jnp.concatenate([input_1, input_2], axis=1)
    conv = jax.lax.conv_general_dilated(
        x, params["w_conv"], window_strides=(1, 1), padding="SAME",
        dimension_numbers=("NCHW", "OIHW", "NCHW"))
    scale = params["gamma"] / jnp.sqrt(params["run_var"] + eps)
    bias = params["beta"] - params["run_mean"] * scale
    feature = jnp.maximum(
        conv * scale[None, :, None, None] + bias[None, :, None, None], 0.0)
    pooled = jnp.mean(feature, axis=(2, 3), keepdims=True)
    z1 = jnp.maximum(
        jnp.einsum("nchw,oc->nohw", pooled, params["w1"][:, :, 0, 0])
        + params["b1"][None, :, None, None], 0.0)
    z2 = jax.nn.sigmoid(
        jnp.einsum("nchw,oc->nohw", z1, params["w2"][:, :, 0, 0])
        + params["b2"][None, :, None, None])
    return feature * z2 + feature


if __name__ == "__main__":
    # batch=2, in_channels=4 (two 2-channel inputs), 16x16 spatial,
    # num_classes=8.  tile_rows=8 -> 2 row tiles per image, exercising the
    # cross-tile pooled-sum / prefetch / finalize paths.  Both conv paths
    # (stacked-K and per-tap) are checked against the pure-JAX reference.
    N, H, W = 2, 16, 16
    c1, c2 = 2, 2
    in_channels = c1 + c2
    num_classes = 8

    key = jax.random.PRNGKey(0)
    ks = jax.random.split(key, 10)

    input_1 = jax.random.normal(ks[0], (N, c1, H, W), dtype=jnp.float32)
    input_2 = jax.random.normal(ks[1], (N, c2, H, W), dtype=jnp.float32)

    params = {
        # ConvBlock: Conv2d(in_channels, num_classes, k=3, s=1, p=1, bias=False)
        "w_conv": 0.1 * jax.random.normal(ks[2], (num_classes, in_channels, 3, 3),
                                          dtype=jnp.float32),
        # BatchNorm2d(num_classes) — inference-mode stats
        "gamma": 1.0 + 0.1 * jax.random.normal(ks[3], (num_classes,), dtype=jnp.float32),
        "beta": 0.1 * jax.random.normal(ks[4], (num_classes,), dtype=jnp.float32),
        "run_mean": 0.05 * jax.random.normal(ks[5], (num_classes,), dtype=jnp.float32),
        "run_var": jnp.abs(1.0 + 0.1 * jax.random.normal(ks[6], (num_classes,),
                                                         dtype=jnp.float32)),
        # conv1 / conv2: 1x1 convs with bias
        "w1": 0.2 * jax.random.normal(ks[7], (num_classes, num_classes, 1, 1),
                                      dtype=jnp.float32),
        "b1": 0.05 * jnp.arange(num_classes, dtype=jnp.float32),
        "b2": -0.05 * jnp.arange(num_classes, dtype=jnp.float32),
        "w2": 0.2 * jax.random.normal(ks[8], (num_classes, num_classes, 1, 1),
                                      dtype=jnp.float32),
    }

    ref = jax.block_until_ready(reference_forward(input_1, input_2, params))

    out_stacked = jax.block_until_ready(
        feature_fusion_forward(input_1, input_2, params, tile_rows=8,
                               conv_mode="stacked"))
    out_taps = jax.block_until_ready(
        feature_fusion_forward(input_1, input_2, params, tile_rows=8,
                               conv_mode="taps"))

    assert out_stacked.shape == (N, num_classes, H, W)
    assert out_taps.shape == (N, num_classes, H, W)
    # The conv activation/weight stream is bf16; compare against the pure-f32
    # reference with a correspondingly relaxed tolerance.
    assert jnp.allclose(out_stacked, ref, atol=2e-2, rtol=2e-2), \
        float(jnp.max(jnp.abs(out_stacked - ref)))
    assert jnp.allclose(out_taps, ref, atol=2e-2, rtol=2e-2), \
        float(jnp.max(jnp.abs(out_taps - ref)))

    print("KERNEL_OK")
</pallas_src>

<mosaic_0001>
module attributes {stable_mosaic.version = 11 : i64} {
  func.func @kernel(%arg0: i32, %arg1: i32, %arg2: memref<2x2x640xbf16, #tpu.memory_space<any>>, %arg3: memref<2x2x640xbf16, #tpu.memory_space<any>>, %arg4: memref<8x18xbf16, #tpu.memory_space<vmem>>, %arg5: memref<8x18xbf16, #tpu.memory_space<vmem>>, %arg6: memref<8x19xf32, #tpu.memory_space<vmem>>, %arg7: memref<1x8xf32, #tpu.memory_space<vmem>>, %arg8: memref<1x2x8x256xf32, #tpu.memory_space<vmem>>, %arg9: memref<2x2x384xbf16, #tpu.memory_space<vmem>>, %arg10: memref<2x2x384xbf16, #tpu.memory_space<vmem>>, %arg11: memref<2x2x!tpu.dma_semaphore, #tpu.memory_space<semaphore_mem>>, %arg12: memref<8x1xf32, #tpu.memory_space<vmem>>) attributes {dimension_semantics = [#tpu.dimension_semantics<parallel>, #tpu.dimension_semantics<arbitrary>], iteration_bounds = array<i64: 2, 2>, scalar_prefetch = 0 : i64, scratch_operands = 4 : i64, tpu.core_type = #tpu.core_type<tc>, window_params = [{}, {}, {pipeline_mode = #tpu.pipeline_mode<synchronous>, transform_indices = @transform_2, window_bounds = array<i64: 8, 18>}, {pipeline_mode = #tpu.pipeline_mode<synchronous>, transform_indices = @transform_3, window_bounds = array<i64: 8, 18>}, {pipeline_mode = #tpu.pipeline_mode<synchronous>, transform_indices = @transform_4, window_bounds = array<i64: 8, 19>}, {pipeline_mode = #tpu.pipeline_mode<synchronous>, transform_indices = @transform_5, window_bounds = array<i64: 1, 8>}, {transform_indices = @transform_6, window_bounds = array<i64: 1, 2, 8, 256>}]} {
    %c1_i32 = arith.constant 1 : i32
    %0 = arith.andi %arg1, %c1_i32 : i32
    %c0_i32 = arith.constant 0 : i32
    %1 = arith.cmpi eq, %arg1, %c0_i32 : i32
    %2 = arith.extui %1 : i1 to i32
    %c0_i32_0 = arith.constant 0 : i32
    %3 = arith.cmpi ne, %2, %c0_i32_0 : i32
    scf.if %3 {
      %cst_66 = arith.constant 0.000000e+00 : f32
      %126 = vector.broadcast %cst_66 : f32 to vector<8x1xf32>
      %c0_67 = arith.constant 0 : index
      %c0_68 = arith.constant 0 : index
      %127 = vector.load %arg12[%c0_67, %c0_68] : memref<8x1xf32, #tpu.memory_space<vmem>>, vector<8x1xf32>
      tpu.vector_store %arg12[%c0_67, %c0_68], %126 {strides = array<i32>} : memref<8x1xf32, #tpu.memory_space<vmem>>, vector<8x1xf32>,
      %c256_i32 = arith.constant 256 : i32
      %128 = arith.muli %arg1, %c256_i32 : i32
      %c0_i32_69 = arith.constant 0 : i32
      %c0_i32_70 = arith.constant 0 : i32
      %129 = tpu.memref_slice %arg2[%arg0, %c0_i32_70, %128] : memref<2x2x640xbf16, #tpu.memory_space<any>> -> memref<1x2x384xbf16, #tpu.memory_space<any>>
      %130 = tpu.memref_squeeze %129 : memref<1x2x384xbf16, #tpu.memory_space<any>> -> memref<2x384xbf16, #tpu.memory_space<any>>
      %c0_i32_71 = arith.constant 0 : i32
      %c0_i32_72 = arith.constant 0 : i32
      %131 = tpu.memref_slice %arg9[%0, %c0_i32_71, %c0_i32_72] : memref<2x2x384xbf16, #tpu.memory_space<vmem>> -> memref<1x2x384xbf16, #tpu.memory_space<vmem>>
      %132 = tpu.memref_squeeze %131 : memref<1x2x384xbf16, #tpu.memory_space<vmem>> -> memref<2x384xbf16, #tpu.memory_space<vmem>>
      %133 = tpu.memref_slice %arg11[%0, %c0_i32_69] : memref<2x2x!tpu.dma_semaphore, #tpu.memory_space<semaphore_mem>> -> memref<1x1x!tpu.dma_semaphore, #tpu.memory_space<semaphore_mem>>
      %134 = tpu.memref_squeeze %133 : memref<1x1x!tpu.dma_semaphore, #tpu.memory_space<semaphore_mem>> -> memref<!tpu.dma_semaphore, #tpu.memory_space<semaphore_mem>>
      tpu.enqueue_dma source(%130 : memref<2x384xbf16, #tpu.memory_space<any>>) target(%132 : memref<2x384xbf16, #tpu.memory_space<vmem>>) target_semaphore(%134 : memref<!tpu.dma_semaphore, #tpu.memory_space<semaphore_mem>>)
      %c1_i32_73 = arith.constant 1 : i32
      %c0_i32_74 = arith.constant 0 : i32
      %135 = tpu.memref_slice %arg3[%arg0, %c0_i32_74, %128] : memref<2x2x640xbf16, #tpu.memory_space<any>> -> memref<1x2x384xbf16, #tpu.memory_space<any>>
      %136 = tpu.memref_squeeze %135 : memref<1x2x384xbf16, #tpu.memory_space<any>> -> memref<2x384xbf16, #tpu.memory_space<any>>
      %c0_i32_75 = arith.constant 0 : i32
      %c0_i32_76 = arith.constant 0 : i32
      %137 = tpu.memref_slice %arg10[%0, %c0_i32_75, %c0_i32_76] : memref<2x2x384xbf16, #tpu.memory_space<vmem>> -> memref<1x2x384xbf16, #tpu.memory_space<vmem>>
      %138 = tpu.memref_squeeze %137 : memref<1x2x384xbf16, #tpu.memory_space<vmem>> -> memref<2x384xbf16, #tpu.memory_space<vmem>>
      %139 = tpu.memref_slice %arg11[%0, %c1_i32_73] : memref<2x2x!tpu.dma_semaphore, #tpu.memory_space<semaphore_mem>> -> memref<1x1x!tpu.dma_semaphore, #tpu.memory_space<semaphore_mem>>
      %140 = tpu.memref_squeeze %139 : memref<1x1x!tpu.dma_semaphore, #tpu.memory_space<semaphore_mem>> -> memref<!tpu.dma_semaphore, #tpu.memory_space<semaphore_mem>>
      tpu.enqueue_dma source(%136 : memref<2x384xbf16, #tpu.memory_space<any>>) target(%138 : memref<2x384xbf16, #tpu.memory_space<vmem>>) target_semaphore(%140 : memref<!tpu.dma_semaphore, #tpu.memory_space<semaphore_mem>>)
    } else {
    }
    %c1_i32_1 = arith.constant 1 : i32
    %4 = arith.addi %arg1, %c1_i32_1 : i32
    %c2_i32 = arith.constant 2 : i32
    %5 = arith.cmpi slt, %4, %c2_i32 : i32
    %6 = arith.extui %5 : i1 to i32
    %c0_i32_2 = arith.constant 0 : i32
    %7 = arith.cmpi ne, %6, %c0_i32_2 : i32
    scf.if %7 {
      %c1_i32_66 = arith.constant 1 : i32
      %126 = arith.addi %arg1, %c1_i32_66 : i32
      %c1_i32_67 = arith.constant 1 : i32
      %127 = arith.subi %c1_i32_67, %0 : i32
      %c256_i32 = arith.constant 256 : i32
      %128 = arith.muli %126, %c256_i32 : i32
      %c0_i32_68 = arith.constant 0 : i32
      %c0_i32_69 = arith.constant 0 : i32
      %129 = tpu.memref_slice %arg2[%arg0, %c0_i32_69, %128] : memref<2x2x640xbf16, #tpu.memory_space<any>> -> memref<1x2x384xbf16, #tpu.memory_space<any>>
      %130 = tpu.memref_squeeze %129 : memref<1x2x384xbf16, #tpu.memory_space<any>> -> memref<2x384xbf16, #tpu.memory_space<any>>
      %c0_i32_70 = arith.constant 0 : i32
      %c0_i32_71 = arith.constant 0 : i32
      %131 = tpu.memref_slice %arg9[%127, %c0_i32_70, %c0_i32_71] : memref<2x2x384xbf16, #tpu.memory_space<vmem>> -> memref<1x2x384xbf16, #tpu.memory_space<vmem>>
      %132 = tpu.memref_squeeze %131 : memref<1x2x384xbf16, #tpu.memory_space<vmem>> -> memref<2x384xbf16, #tpu.memory_space<vmem>>
      %133 = tpu.memref_slice %arg11[%127, %c0_i32_68] : memref<2x2x!tpu.dma_semaphore, #tpu.memory_space<semaphore_mem>> -> memref<1x1x!tpu.dma_semaphore, #tpu.memory_space<semaphore_mem>>
      %134 = tpu.memref_squeeze %133 : memref<1x1x!tpu.dma_semaphore, #tpu.memory_space<semaphore_mem>> -> memref<!tpu.dma_semaphore, #tpu.memory_space<semaphore_mem>>
      tpu.enqueue_dma source(%130 : memref<2x384xbf16, #tpu.memory_space<any>>) target(%132 : memref<2x384xbf16, #tpu.memory_space<vmem>>) target_semaphore(%134 : memref<!tpu.dma_semaphore, #tpu.memory_space<semaphore_mem>>)
      %c1_i32_72 = arith.constant 1 : i32
      %c0_i32_73 = arith.constant 0 : i32
      %135 = tpu.memref_slice %arg3[%arg0, %c0_i32_73, %128] : memref<2x2x640xbf16, #tpu.memory_space<any>> -> memref<1x2x384xbf16, #tpu.memory_space<any>>
      %136 = tpu.memref_squeeze %135 : memref<1x2x384xbf16, #tpu.memory_space<any>> -> memref<2x384xbf16, #tpu.memory_space<any>>
      %c0_i32_74 = arith.constant 0 : i32
      %c0_i32_75 = arith.constant 0 : i32
      %137 = tpu.memref_slice %arg10[%127, %c0_i32_74, %c0_i32_75] : memref<2x2x384xbf16, #tpu.memory_space<vmem>> -> memref<1x2x384xbf16, #tpu.memory_space<vmem>>
      %138 = tpu.memref_squeeze %137 : memref<1x2x384xbf16, #tpu.memory_space<vmem>> -> memref<2x384xbf16, #tpu.memory_space<vmem>>
      %139 = tpu.memref_slice %arg11[%127, %c1_i32_72] : memref<2x2x!tpu.dma_semaphore, #tpu.memory_space<semaphore_mem>> -> memref<1x1x!tpu.dma_semaphore, #tpu.memory_space<semaphore_mem>>
      %140 = tpu.memref_squeeze %139 : memref<1x1x!tpu.dma_semaphore, #tpu.memory_space<semaphore_mem>> -> memref<!tpu.dma_semaphore, #tpu.memory_space<semaphore_mem>>
      tpu.enqueue_dma source(%136 : memref<2x384xbf16, #tpu.memory_space<any>>) target(%138 : memref<2x384xbf16, #tpu.memory_space<vmem>>) target_semaphore(%140 : memref<!tpu.dma_semaphore, #tpu.memory_space<semaphore_mem>>)
    } else {
    }
    %c0_i32_3 = arith.constant 0 : i32
    %c0_i32_4 = arith.constant 0 : i32
    %c0_i32_5 = arith.constant 0 : i32
    %c0_i32_6 = arith.constant 0 : i32
    %8 = tpu.memref_slice %arg2[%c0_i32_3, %c0_i32_5, %c0_i32_6] : memref<2x2x640xbf16, #tpu.memory_space<any>> -> memref<1x2x384xbf16, #tpu.memory_space<any>>
    %9 = tpu.memref_squeeze %8 : memref<1x2x384xbf16, #tpu.memory_space<any>> -> memref<2x384xbf16, #tpu.memory_space<any>>
    %c0_i32_7 = arith.constant 0 : i32
    %c0_i32_8 = arith.constant 0 : i32
    %10 = tpu.memref_slice %arg9[%0, %c0_i32_7, %c0_i32_8] : memref<2x2x384xbf16, #tpu.memory_space<vmem>> -> memref<1x2x384xbf16, #tpu.memory_space<vmem>>
    %11 = tpu.memref_squeeze %10 : memref<1x2x384xbf16, #tpu.memory_space<vmem>> -> memref<2x384xbf16, #tpu.memory_space<vmem>>
    %12 = tpu.memref_slice %arg11[%0, %c0_i32_4] : memref<2x2x!tpu.dma_semaphore, #tpu.memory_space<semaphore_mem>> -> memref<1x1x!tpu.dma_semaphore, #tpu.memory_space<semaphore_mem>>
    %13 = tpu.memref_squeeze %12 : memref<1x1x!tpu.dma_semaphore, #tpu.memory_space<semaphore_mem>> -> memref<!tpu.dma_semaphore, #tpu.memory_space<semaphore_mem>>
    tpu.wait_dma2 semaphore(%13 : memref<!tpu.dma_semaphore, #tpu.memory_space<semaphore_mem>>) src(%9 : memref<2x384xbf16, #tpu.memory_space<any>>) dst(%11 : memref<2x384xbf16, #tpu.memory_space<vmem>>)
    %c0_i32_9 = arith.constant 0 : i32
    %c1_i32_10 = arith.constant 1 : i32
    %c0_i32_11 = arith.constant 0 : i32
    %c0_i32_12 = arith.constant 0 : i32
    %14 = tpu.memref_slice %arg3[%c0_i32_9, %c0_i32_11, %c0_i32_12] : memref<2x2x640xbf16, #tpu.memory_space<any>> -> memref<1x2x384xbf16, #tpu.memory_space<any>>
    %15 = tpu.memref_squeeze %14 : memref<1x2x384xbf16, #tpu.memory_space<any>> -> memref<2x384xbf16, #tpu.memory_space<any>>
    %c0_i32_13 = arith.constant 0 : i32
    %c0_i32_14 = arith.constant 0 : i32
    %16 = tpu.memref_slice %arg10[%0, %c0_i32_13, %c0_i32_14] : memref<2x2x384xbf16, #tpu.memory_space<vmem>> -> memref<1x2x384xbf16, #tpu.memory_space<vmem>>
    %17 = tpu.memref_squeeze %16 : memref<1x2x384xbf16, #tpu.memory_space<vmem>> -> memref<2x384xbf16, #tpu.memory_space<vmem>>
    %18 = tpu.memref_slice %arg11[%0, %c1_i32_10] : memref<2x2x!tpu.dma_semaphore, #tpu.memory_space<semaphore_mem>> -> memref<1x1x!tpu.dma_semaphore, #tpu.memory_space<semaphore_mem>>
    %19 = tpu.memref_squeeze %18 : memref<1x1x!tpu.dma_semaphore, #tpu.memory_space<semaphore_mem>> -> memref<!tpu.dma_semaphore, #tpu.memory_space<semaphore_mem>>
    tpu.wait_dma2 semaphore(%19 : memref<!tpu.dma_semaphore, #tpu.memory_space<semaphore_mem>>) src(%15 : memref<2x384xbf16, #tpu.memory_space<any>>) dst(%17 : memref<2x384xbf16, #tpu.memory_space<vmem>>)
    %c0 = arith.constant 0 : index
    %c0_15 = arith.constant 0 : index
    %20 = vector.load %arg6[%c0, %c0_15] : memref<8x19xf32, #tpu.memory_space<vmem>>, vector<8x1xf32>
    %c0_16 = arith.constant 0 : index
    %c1 = arith.constant 1 : index
    %21 = vector.load %arg6[%c0_16, %c1] : memref<8x19xf32, #tpu.memory_space<vmem>>, vector<8x1xf32>
    %c8_i32 = arith.constant 8 : i32
    %22 = arith.muli %arg1, %c8_i32 : i32
    %23 = arith.sitofp %22 : i32 to f32
    %24 = arith.index_cast %0 : i32 to index
    %c0_17 = arith.constant 0 : index
    %c31 = arith.constant 31 : index
    %25 = vector.load %arg9[%24, %c0_17, %c31] : memref<2x2x384xbf16, #tpu.memory_space<vmem>>, vector<1x2x256xbf16>
    %26 = vector.shape_cast %25 : vector<1x2x256xbf16> to vector<2x256xbf16>
    %27 = arith.index_cast %0 : i32 to index
    %c0_18 = arith.constant 0 : index
    %c32 = arith.constant 32 : index
    %28 = vector.load %arg9[%27, %c0_18, %c32] : memref<2x2x384xbf16, #tpu.memory_space<vmem>>, vector<1x2x256xbf16>
    %29 = vector.shape_cast %28 : vector<1x2x256xbf16> to vector<2x256xbf16>
    %30 = arith.index_cast %0 : i32 to index
    %c0_19 = arith.constant 0 : index
    %c33 = arith.constant 33 : index
    %31 = vector.load %arg9[%30, %c0_19, %c33] : memref<2x2x384xbf16, #tpu.memory_space<vmem>>, vector<1x2x256xbf16>
    %32 = vector.shape_cast %31 : vector<1x2x256xbf16> to vector<2x256xbf16>
    %33 = arith.index_cast %0 : i32 to index
    %c0_20 = arith.constant 0 : index
    %c63 = arith.constant 63 : index
    %34 = vector.load %arg9[%33, %c0_20, %c63] : memref<2x2x384xbf16, #tpu.memory_space<vmem>>, vector<1x2x256xbf16>
    %35 = vector.shape_cast %34 : vector<1x2x256xbf16> to vector<2x256xbf16>
    %36 = arith.index_cast %0 : i32 to index
    %c0_21 = arith.constant 0 : index
    %c64 = arith.constant 64 : index
    %37 = vector.load %arg9[%36, %c0_21, %c64] : memref<2x2x384xbf16, #tpu.memory_space<vmem>>, vector<1x2x256xbf16>
    %38 = vector.shape_cast %37 : vector<1x2x256xbf16> to vector<2x256xbf16>
    %39 = arith.index_cast %0 : i32 to index
    %c0_22 = arith.constant 0 : index
    %c65 = arith.constant 65 : index
    %40 = vector.load %arg9[%39, %c0_22, %c65] : memref<2x2x384xbf16, #tpu.memory_space<vmem>>, vector<1x2x256xbf16>
    %41 = vector.shape_cast %40 : vector<1x2x256xbf16> to vector<2x256xbf16>
    %42 = arith.index_cast %0 : i32 to index
    %c0_23 = arith.constant 0 : index
    %c95 = arith.constant 95 : index
    %43 = vector.load %arg9[%42, %c0_23, %c95] : memref<2x2x384xbf16, #tpu.memory_space<vmem>>, vector<1x2x256xbf16>
    %44 = vector.shape_cast %43 : vector<1x2x256xbf16> to vector<2x256xbf16>
    %45 = arith.index_cast %0 : i32 to index
    %c0_24 = arith.constant 0 : index
    %c96 = arith.constant 96 : index
    %46 = vector.load %arg9[%45, %c0_24, %c96] : memref<2x2x384xbf16, #tpu.memory_space<vmem>>, vector<1x2x256xbf16>
    %47 = vector.shape_cast %46 : vector<1x2x256xbf16> to vector<2x256xbf16>
    %48 = arith.index_cast %0 : i32 to index
    %c0_25 = arith.constant 0 : index
    %c97 = arith.constant 97 : index
    %49 = vector.load %arg9[%48, %c0_25, %c97] : memref<2x2x384xbf16, #tpu.memory_space<vmem>>, vector<1x2x256xbf16>
    %50 = vector.shape_cast %49 : vector<1x2x256xbf16> to vector<2x256xbf16>
    %51 = tpu.concatenate %26, %29, %32, %35, %38, %41, %44, %47, %50 in 0 : vector<2x256xbf16>, vector<2x256xbf16>, vector<2x256xbf16>, vector<2x256xbf16>, vector<2x256xbf16>, vector<2x256xbf16>, vector<2x256xbf16>, vector<2x256xbf16>, vector<2x256xbf16> -> vector<18x256xbf16>
    %52 = arith.index_cast %0 : i32 to index
    %c0_26 = arith.constant 0 : index
    %c31_27 = arith.constant 31 : index
    %53 = vector.load %arg10[%52, %c0_26, %c31_27] : memref<2x2x384xbf16, #tpu.memory_space<vmem>>, vector<1x2x256xbf16>
    %54 = vector.shape_cast %53 : vector<1x2x256xbf16> to vector<2x256xbf16>
    %55 = arith.index_cast %0 : i32 to index
    %c0_28 = arith.constant 0 : index
    %c32_29 = arith.constant 32 : index
    %56 = vector.load %arg10[%55, %c0_28, %c32_29] : memref<2x2x384xbf16, #tpu.memory_space<vmem>>, vector<1x2x256xbf16>
    %57 = vector.shape_cast %56 : vector<1x2x256xbf16> to vector<2x256xbf16>
    %58 = arith.index_cast %0 : i32 to index
    %c0_30 = arith.constant 0 : index
    %c33_31 = arith.constant 33 : index
    %59 = vector.load %arg10[%58, %c0_30, %c33_31] : memref<2x2x384xbf16, #tpu.memory_space<vmem>>, vector<1x2x256xbf16>
    %60 = vector.shape_cast %59 : vector<1x2x256xbf16> to vector<2x256xbf16>
    %61 = arith.index_cast %0 : i32 to index
    %c0_32 = arith.constant 0 : index
    %c63_33 = arith.constant 63 : index
    %62 = vector.load %arg10[%61, %c0_32, %c63_33] : memref<2x2x384xbf16, #tpu.memory_space<vmem>>, vector<1x2x256xbf16>
    %63 = vector.shape_cast %62 : vector<1x2x256xbf16> to vector<2x256xbf16>
    %64 = arith.index_cast %0 : i32 to index
    %c0_34 = arith.constant 0 : index
    %c64_35 = arith.constant 64 : index
    %65 = vector.load %arg10[%64, %c0_34, %c64_35] : memref<2x2x384xbf16, #tpu.memory_space<vmem>>, vector<1x2x256xbf16>
    %66 = vector.shape_cast %65 : vector<1x2x256xbf16> to vector<2x256xbf16>
    %67 = arith.index_cast %0 : i32 to index
    %c0_36 = arith.constant 0 : index
    %c65_37 = arith.constant 65 : index
    %68 = vector.load %arg10[%67, %c0_36, %c65_37] : memref<2x2x384xbf16, #tpu.memory_space<vmem>>, vector<1x2x256xbf16>
    %69 = vector.shape_cast %68 : vector<1x2x256xbf16> to vector<2x256xbf16>
    %70 = arith.index_cast %0 : i32 to index
    %c0_38 = arith.constant 0 : index
    %c95_39 = arith.constant 95 : index
    %71 = vector.load %arg10[%70, %c0_38, %c95_39] : memref<2x2x384xbf16, #tpu.memory_space<vmem>>, vector<1x2x256xbf16>
    %72 = vector.shape_cast %71 : vector<1x2x256xbf16> to vector<2x256xbf16>
    %73 = arith.index_cast %0 : i32 to index
    %c0_40 = arith.constant 0 : index
    %c96_41 = arith.constant 96 : index
    %74 = vector.load %arg10[%73, %c0_40, %c96_41] : memref<2x2x384xbf16, #tpu.memory_space<vmem>>, vector<1x2x256xbf16>
    %75 = vector.shape_cast %74 : vector<1x2x256xbf16> to vector<2x256xbf16>
    %76 = arith.index_cast %0 : i32 to index
    %c0_42 = arith.constant 0 : index
    %c97_43 = arith.constant 97 : index
    %77 = vector.load %arg10[%76, %c0_42, %c97_43] : memref<2x2x384xbf16, #tpu.memory_space<vmem>>, vector<1x2x256xbf16>
    %78 = vector.shape_cast %77 : vector<1x2x256xbf16> to vector<2x256xbf16>
    %79 = tpu.concatenate %54, %57, %60, %63, %66, %69, %72, %75, %78 in 0 : vector<2x256xbf16>, vector<2x256xbf16>, vector<2x256xbf16>, vector<2x256xbf16>, vector<2x256xbf16>, vector<2x256xbf16>, vector<2x256xbf16>, vector<2x256xbf16>, vector<2x256xbf16> -> vector<18x256xbf16>
    %c0_44 = arith.constant 0 : index
    %c0_45 = arith.constant 0 : index
    %80 = vector.load %arg4[%c0_44, %c0_45] : memref<8x18xbf16, #tpu.memory_space<vmem>>, vector<8x18xbf16>
    %cst = arith.constant dense<0.000000e+00> : vector<8x256xf32>
    %81 = tpu.matmul %80, %51, %cst {dimension_numbers = #tpu.dot_dimension_numbers<[1], [0], [0], [1], [0, 0, 1, 1], [], []>} : vector<8x18xbf16>, vector<18x256xbf16>, vector<8x256xf32> -> vector<8x256xf32>
    %c0_46 = arith.constant 0 : index
    %c0_47 = arith.constant 0 : index
    %82 = vector.load %arg5[%c0_46, %c0_47] : memref<8x18xbf16, #tpu.memory_space<vmem>>, vector<8x18xbf16>
    %cst_48 = arith.constant dense<0.000000e+00> : vector<8x256xf32>
    %83 = tpu.matmul %82, %79, %cst_48 {dimension_numbers = #tpu.dot_dimension_numbers<[1], [0], [0], [1], [0, 0, 1, 1], [], []>} : vector<8x18xbf16>, vector<18x256xbf16>, vector<8x256xf32> -> vector<8x256xf32>
    %84 = arith.addf %81, %83 : vector<8x256xf32>
    %85 = vector.broadcast %20 : vector<8x1xf32> to vector<8x256xf32>
    %86 = arith.mulf %84, %85 : vector<8x256xf32>
    %87 = vector.broadcast %21 : vector<8x1xf32> to vector<8x256xf32>
    %88 = arith.addf %86, %87 : vector<8x256xf32>
    %cst_49 = arith.constant 0.000000e+00 : f32
    %89 = vector.broadcast %cst_49 : f32 to vector<8x256xf32>
    %90 = arith.maximumf %88, %89 : vector<8x256xf32>
    %c0_50 = arith.constant 0 : index
    %91 = arith.index_cast %arg1 : i32 to index
    %c0_51 = arith.constant 0 : index
    %c0_52 = arith.constant 0 : index
    %92 = vector.load %arg8[%c0_50, %91, %c0_51, %c0_52] : memref<1x2x8x256xf32, #tpu.memory_space<vmem>>, vector<1x1x8x256xf32>
    %93 = vector.shape_cast %92 : vector<1x1x8x256xf32> to vector<8x256xf32>
    %94 = vector.shape_cast %90 : vector<8x256xf32> to vector<1x1x8x256xf32>
    tpu.vector_store %arg8[%c0_50, %91, %c0_51, %c0_52], %94 {strides = array<i32>} : memref<1x2x8x256xf32, #tpu.memory_space<vmem>>, vector<1x1x8x256xf32>,
    %95 = tpu.iota {dimensions = array<i32: 1>} : vector<8x256xi32>
    %c0_i32_53 = arith.constant 0 : i32
    %96 = vector.broadcast %c0_i32_53 : i32 to vector<8x256xi32>
    %97 = arith.addi %95, %96 : vector<8x256xi32>
    %98 = arith.sitofp %97 : vector<8x256xi32> to vector<8x256xf32>
    %cst_54 = arith.constant 3.125000e-02 : f32
    %99 = vector.broadcast %cst_54 : f32 to vector<8x256xf32>
    %100 = arith.mulf %98, %99 : vector<8x256xf32>
    %101 = math.floor %100 : vector<8x256xf32>
    %cst_55 = arith.constant 3.200000e+01 : f32
    %102 = vector.broadcast %cst_55 : f32 to vector<8x256xf32>
    %103 = arith.mulf %101, %102 : vector<8x256xf32>
    %104 = arith.subf %98, %103 : vector<8x256xf32>
    %105 = vector.broadcast %23 : f32 to vector<8x256xf32>
    %106 = arith.addf %101, %105 : vector<8x256xf32>
    %cst_56 = arith.constant 5.000000e-01 : f32
    %107 = vector.broadcast %cst_56 : f32 to vector<8x256xf32>
    %108 = arith.cmpf oge, %104, %107 : vector<8x256xf32>
    %cst_57 = arith.constant 1.650000e+01 : f32
    %109 = vector.broadcast %cst_57 : f32 to vector<8x256xf32>
    %110 = arith.cmpf ole, %104, %109 : vector<8x256xf32>
    %111 = arith.andi %108, %110 : vector<8x256xi1>
    %cst_58 = arith.constant 1.550000e+01 : f32
    %112 = vector.broadcast %cst_58 : f32 to vector<8x256xf32>
    %113 = arith.cmpf ole, %106, %112 : vector<8x256xf32>
    %114 = arith.andi %111, %113 : vector<8x256xi1>
    %c0_59 = arith.constant 0 : index
    %c0_60 = arith.constant 0 : index
    %115 = vector.load %arg12[%c0_59, %c0_60] : memref<8x1xf32, #tpu.memory_space<vmem>>, vector<8x1xf32>
    %116 = arith.extui %114 : vector<8x256xi1> to vector<8x256xi32>
    %117 = arith.sitofp %116 : vector<8x256xi32> to vector<8x256xf32>
    %118 = arith.mulf %90, %117 : vector<8x256xf32>
    %cst_61 = arith.constant dense<0.000000e+00> : vector<8xf32>
    %119 = vector.multi_reduction <add>, %118, %cst_61 [1] : vector<8x256xf32> to vector<8xf32>
    %120 = vector.shape_cast %119 : vector<8xf32> to vector<8x1xf32>
    %121 = arith.addf %115, %120 : vector<8x1xf32>
    %c0_62 = arith.constant 0 : index
    %c0_63 = arith.constant 0 : index
    %122 = vector.load %arg12[%c0_62, %c0_63] : memref<8x1xf32, #tpu.memory_space<vmem>>, vector<8x1xf32>
    tpu.vector_store %arg12[%c0_62, %c0_63], %121 {strides = array<i32>} : memref<8x1xf32, #tpu.memory_space<vmem>>, vector<8x1xf32>,
    %c1_i32_64 = arith.constant 1 : i32
    %123 = arith.cmpi eq, %arg1, %c1_i32_64 : i32
    %124 = arith.extui %123 : i1 to i32
    %c0_i32_65 = arith.constant 0 : i32
    %125 = arith.cmpi ne, %124, %c0_i32_65 : i32
    scf.if %125 {
      %c0_66 = arith.constant 0 : index
      %c0_67 = arith.constant 0 : index
      %126 = vector.load %arg12[%c0_66, %c0_67] : memref<8x1xf32, #tpu.memory_space<vmem>>, vector<8x1xf32>
      %cst_68 = arith.constant 3.906250e-03 : f32
      %127 = vector.broadcast %cst_68 : f32 to vector<8x1xf32>
      %128 = arith.mulf %126, %127 : vector<8x1xf32>
      %c0_69 = arith.constant 0 : index
      %c3 = arith.constant 3 : index
      %129 = vector.load %arg6[%c0_69, %c3] : memref<8x19xf32, #tpu.memory_space<vmem>>, vector<8x8xf32>
      %c0_70 = arith.constant 0 : index
      %c11 = arith.constant 11 : index
      %130 = vector.load %arg6[%c0_70, %c11] : memref<8x19xf32, #tpu.memory_space<vmem>>, vector<8x8xf32>
      %c0_71 = arith.constant 0 : index
      %c0_72 = arith.constant 0 : index
      %131 = vector.load %arg7[%c0_71, %c0_72] : memref<1x8xf32, #tpu.memory_space<vmem>>, vector<1x8xf32>
      %c0_73 = arith.constant 0 : index
      %c2 = arith.constant 2 : index
      %132 = vector.load %arg6[%c0_73, %c2] : memref<8x19xf32, #tpu.memory_space<vmem>>, vector<8x1xf32>
      %133 = vector.broadcast %128 : vector<8x1xf32> to vector<8x8xf32>
      %134 = arith.mulf %129, %133 : vector<8x8xf32>
      %cst_74 = arith.constant dense<0.000000e+00> : vector<8xf32>
      %135 = vector.multi_reduction <add>, %134, %cst_74 [0] : vector<8x8xf32> to vector<8xf32>
      %136 = vector.shape_cast %135 : vector<8xf32> to vector<1x8xf32>
      %137 = arith.addf %136, %131 : vector<1x8xf32>
      %cst_75 = arith.constant 0.000000e+00 : f32
      %138 = vector.broadcast %cst_75 : f32 to vector<1x8xf32>
      %139 = arith.maximumf %137, %138 : vector<1x8xf32>
      %140 = vector.broadcast %139 : vector<1x8xf32> to vector<8x8xf32>
      %141 = arith.mulf %130, %140 : vector<8x8xf32>
      %cst_76 = arith.constant dense<0.000000e+00> : vector<8xf32>
      %142 = vector.multi_reduction <add>, %141, %cst_76 [1] : vector<8x8xf32> to vector<8xf32>
      %143 = vector.shape_cast %142 : vector<8xf32> to vector<8x1xf32>
      %144 = arith.addf %143, %132 : vector<8x1xf32>
      %145 = arith.negf %144 : vector<8x1xf32>
      %146 = math.exp %145 : vector<8x1xf32>
      %cst_77 = arith.constant 1.000000e+00 : f32
      %147 = vector.broadcast %cst_77 : f32 to vector<8x1xf32>
      %148 = arith.addf %147, %146 : vector<8x1xf32>
      %149 = arith.divf %147, %148 : vector<8x1xf32>
      %cst_78 = arith.constant 1.000000e+00 : f32
      %150 = vector.broadcast %cst_78 : f32 to vector<8x1xf32>
      %151 = arith.addf %150, %149 : vector<8x1xf32>
      %c0_i32_79 = arith.constant 0 : i32
      %c2_i32_80 = arith.constant 2 : i32
      %152 = arith.addi %c0_i32_79, %c2_i32_80 : i32
      %c1_i32_81 = arith.constant 1 : i32
      scf.for %arg13 = %c0_i32_79 to %152 step %c1_i32_81  : i32 {
        %c0_83 = arith.constant 0 : index
        %153 = arith.index_cast %arg13 : i32 to index
        %c0_84 = arith.constant 0 : index
        %c0_85 = arith.constant 0 : index
        %154 = vector.load %arg8[%c0_83, %153, %c0_84, %c0_85] : memref<1x2x8x256xf32, #tpu.memory_space<vmem>>, vector<1x1x8x256xf32>
        %155 = vector.shape_cast %154 : vector<1x1x8x256xf32> to vector<8x256xf32>
        %156 = vector.broadcast %151 : vector<8x1xf32> to vector<8x256xf32>
        %157 = arith.mulf %155, %156 : vector<8x256xf32>
        %c0_86 = arith.constant 0 : index
        %158 = arith.index_cast %arg13 : i32 to index
        %c0_87 = arith.constant 0 : index
        %c0_88 = arith.constant 0 : index
        %159 = vector.load %arg8[%c0_86, %158, %c0_87, %c0_88] : memref<1x2x8x256xf32, #tpu.memory_space<vmem>>, vector<1x1x8x256xf32>
        %160 = vector.shape_cast %159 : vector<1x1x8x256xf32> to vector<8x256xf32>
        %161 = vector.shape_cast %157 : vector<8x256xf32> to vector<1x1x8x256xf32>
        tpu.vector_store %arg8[%c0_86, %158, %c0_87, %c0_88], %161 {strides = array<i32>} : memref<1x2x8x256xf32, #tpu.memory_space<vmem>>, vector<1x1x8x256xf32>,
      }
      %c2_i32_82 = arith.constant 2 : i32
    } else {
    }
    return
  }
  func.func @transform_2(%arg0: i32, %arg1: i32) -> (i32, i32) {
    %c0_i32 = arith.constant 0 : i32
    %c0_i32_0 = arith.constant 0 : i32
    %c0_i32_1 = arith.constant 0 : i32
    return %c0_i32, %c0_i32_0 : i32, i32
  }
  func.func @transform_3(%arg0: i32, %arg1: i32) -> (i32, i32) {
    %c0_i32 = arith.constant 0 : i32
    %c0_i32_0 = arith.constant 0 : i32
    %c0_i32_1 = arith.constant 0 : i32
    return %c0_i32, %c0_i32_0 : i32, i32
  }
  func.func @transform_4(%arg0: i32, %arg1: i32) -> (i32, i32) {
    %c0_i32 = arith.constant 0 : i32
    %c0_i32_0 = arith.constant 0 : i32
    %c0_i32_1 = arith.constant 0 : i32
    return %c0_i32, %c0_i32_0 : i32, i32
  }
  func.func @transform_5(%arg0: i32, %arg1: i32) -> (i32, i32) {
    %c0_i32 = arith.constant 0 : i32
    %c0_i32_0 = arith.constant 0 : i32
    %c0_i32_1 = arith.constant 0 : i32
    return %c0_i32, %c0_i32_0 : i32, i32
  }
  func.func @transform_6(%arg0: i32, %arg1: i32) -> (i32, i32, i32, i32) {
    %c0_i32 = arith.constant 0 : i32
    %c0_i32_0 = arith.constant 0 : i32
    %c0_i32_1 = arith.constant 0 : i32
    %c0_i32_2 = arith.constant 0 : i32
    return %arg0, %c0_i32, %c0_i32_0, %c0_i32_1 : i32, i32, i32, i32
  }
}

</mosaic_0001>

<llo_original>
// kernel: tpu_custom_call.1
$region0: #{tpu_custom_call.1}
  #allocation0 [shape = 'u32[]', space=smem, size = 0x4, offset = 0x4, fixed_abs, tag = 'smem constant byte address 0x4 - core index']
  #allocation1 [shape = 'u32[144,128]{1,0:T(1,128)}', space=vmem, size = 0x12000, scoped, tag = 'internal scratch']
  #allocation2 [shape = 'bf16[2,2,384]{2,1,0:T(2,128)(2,1)}', space=vmem, size = 0xc00, scoped, tag = 'scratch operand']
  #allocation3 [shape = 'bf16[2,2,384]{2,1,0:T(2,128)(2,1)}', space=vmem, size = 0xc00, scoped, tag = 'scratch operand']
  #allocation4 [shape = 's32[4]{0}', space=sflag, size = 0x10, scoped, tag = 'scratch operand']
  #allocation5 [shape = 'f32[8,1]{1,0:T(8,128)}', space=vmem, size = 0x1000, scoped, tag = 'scratch operand']
  #allocation12 [shape = 's32[]', space=sflag, size = 0x4, offset = 0, fixed_abs, tag = 'sflag constant byte address 0x0 - dummy sync flag']
  #allocation13 [shape = 's32[]', space=sflag, size = 0x4, offset = 0, fixed_abs, tag = 'sflag constant byte address 0x0 - dummy sync flag']
  #allocation14 [shape = 'u32[]', space=smem, size = 0x4, offset = 0x44, fixed_abs, tag = 'smem constant byte address 0x44 - assertion arg 0']
  #allocation15 [shape = 'u32[]', space=smem, size = 0x4, offset = 0x48, fixed_abs, tag = 'smem constant byte address 0x48 - assertion arg 1']
  #allocation16 [shape = 's32[]', space=sflag, size = 0x4, offset = 0, fixed_abs, tag = 'sflag constant byte address 0x0 - dummy sync flag']
  #allocation17 [shape = 's32[]', space=sflag, size = 0x4, offset = 0, fixed_abs, tag = 'sflag constant byte address 0x0 - dummy sync flag']
  #allocation18 [shape = 's32[]', space=sflag, size = 0x4, offset = 0, fixed_abs, tag = 'sflag constant byte address 0x0 - dummy sync flag']
  #allocation19 [shape = 's32[]', space=sflag, size = 0x4, offset = 0, fixed_abs, tag = 'sflag constant byte address 0x0 - dummy sync flag']
  #allocation20 [shape = 's32[]', space=sflag, size = 0x4, offset = 0, fixed_abs, tag = 'sflag constant byte address 0x0 - dummy sync flag']
  #allocation21 [shape = 's32[]', space=sflag, size = 0x4, offset = 0, fixed_abs, tag = 'sflag constant byte address 0x0 - dummy sync flag']
  %s0 = inlined_call_operand.hbm [shape: bf16[2,2,640], index: 0, kind: input, shape index: {}]
  %s1 = inlined_call_operand.hbm [shape: bf16[2,2,640], index: 1, kind: input, shape index: {}]
  %s2 = inlined_call_operand.hbm [shape: bf16[8,18], index: 2, kind: input, shape index: {}]
  %s3 = inlined_call_operand.vmem [shape: bf16[8,18], index: 3, kind: input, shape index: {}]
  %s4 = inlined_call_operand.hbm [shape: f32[8,19], index: 4, kind: input, shape index: {}]
  %s5 = inlined_call_operand.vmem [shape: f32[1,8], index: 5, kind: input, shape index: {}]
  %s6 = inlined_call_operand.hbm [shape: f32[2,2,8,256], index: 6, kind: output, shape index: {}]
  %s7 = sld [smem:[#allocation0]]
  $region92: #{tpu_custom_call.1} parent=0
    _
  %s9 = ssub.s32 1, %s7
  %s10 = scalar_select 0, %s9, %s7
  $region1: #{tpu_custom_call.1} parent=0
    #allocation6 [shape = 'u8[2048]{0}', space=vmem, size = 0x800, scoped, tag = 'input window, operand 2, single buffered']
    #allocation7 [shape = 's32[2]{0}', space=sflag, size = 0x8, scoped, tag = 'scoped memory for tpu_custom_call.1']
    #allocation8 [shape = 's32[2]{0}', space=sflag, size = 0x8, scoped, tag = 'scoped memory for tpu_custom_call.1']
    #allocation9 [shape = 'u8[4096]{0}', space=vmem, size = 0x1000, scoped, tag = 'input window, operand 4, single buffered']
    #allocation10 [shape = 's32[1]{0}', space=sflag, size = 0x4, scoped, tag = 'scoped memory for tpu_custom_call.1']
    #allocation11 [shape = 'u8[32768]{0}', space=vmem, size = 0x8000, scoped, tag = 'output window, operand 0']
    %11 = vsyncpa [#allocation7], 0
    %12 = vsyncpa [#allocation10], 0
    %13 = vsyncpa [#allocation8], 0
    %s14 = scalar_lea.sflag [#allocation8], 1
    %15 = vsyncpa %s14, 0
    loop: start=0, step=1, limit=6
    $region2: #{tpu_custom_call.1} parent=1 // loop_pre_header
      _
    $region3: #{tpu_custom_call.1} parent=1 // loop_header
      %s17 = sphi 0, %s21
      %p18 = scmp.ge.s32.totalorder %s17, 6
      %s24 = sphi 0, %s36
      %s25 = sphi 0, %s32
      %s26 = sphi 0, %s24
      %s27 = sphi 0, %s25
      %s28 = sphi 0, %s26
      %s29 = sphi 0, %s27
      %s37 = sphi 0, %s37
      %s39 = sphi 0, %s37
      %s40 = sphi 0, %s39
      %s54 = sphi 0, %s40
      %s58 = sphi 0, %s58
      %s60 = sphi 0, %s58
      %s61 = sphi 0, %s60
      %s75 = sphi 0, %s61
      %s79 = sphi 0, %s79
      %s81 = sphi 0, %s79
      %s82 = sphi 0, %s81
      %s96 = sphi 0, %s82
      %s100 = sphi 0, %s100
      %s102 = sphi 0, %s100
      %s103 = sphi 0, %s102
      %s117 = sphi 0, %s103
      %s123 = sphi 0, %s125
      %s126 = sphi 0, %s123
      %s127 = sphi 0, %s126
      %s143 = sphi 0, %s127
    $region4: #{tpu_custom_call.1} parent=1 // loop_header_branch
      %20 = sbr.rel (%p18) target = $region8
    $region5: #{tpu_custom_call.1} parent=1 // loop_body
      %s22 = ssub.s32 %s17, 1
      %s23 = ssub.s32 %s17, 2
      %s30 = sadd.s32 1, %s25
      %p31 = scmp.ge.s32.totalorder %s30, 2
      %s32 = scalar_select %p31, 0, %s30
      %s33 = sadd.s32 1, %s24
      %s34 = scalar_select %p31, %s33, %s24
      %p35 = scmp.ge.s32.totalorder %s34, 2
      %s36 = scalar_select %p35, 0, %s34
      %s38 = sadd.s32 %s37, 1
      %p41 = scmp.eq.s32.totalorder %s17, 3
      %p42 = scmp.ne.s32.totalorder %s37, %s39
      %p43 = scmp.eq.s32.totalorder %s17, 0
      %p44 = por %p42, %p43
      %p45 = scmp.ne.s32.totalorder %s37, %s39
      %p46 = scmp.eq.s32.totalorder %s22, 3
      %p47 = por %p45, %p46
      %p48 = scmp.ne.s32.totalorder %s39, %s40
      %p49 = scmp.eq.s32.totalorder %s22, 0
      %p50 = por %p48, %p49
      %p51 = scmp.ne.s32.totalorder %s39, %s40
      %p52 = scmp.eq.s32.totalorder %s23, 3
      %p53 = por %p51, %p52
      %p55 = scmp.ne.s32.totalorder %s40, %s54
      %p56 = scmp.eq.s32.totalorder %s23, 0
      %p57 = por %p55, %p56
      %s59 = sadd.s32 %s58, 1
      %p62 = scmp.eq.s32.totalorder %s17, 3
      %p63 = scmp.ne.s32.totalorder %s58, %s60
      %p64 = scmp.eq.s32.totalorder %s17, 0
      %p65 = por %p63, %p64
      %p66 = scmp.ne.s32.totalorder %s58, %s60
      %p67 = scmp.eq.s32.totalorder %s22, 3
      %p68 = por %p66, %p67
      %p69 = scmp.ne.s32.totalorder %s60, %s61
      %p70 = scmp.eq.s32.totalorder %s22, 0
      %p71 = por %p69, %p70
      %p72 = scmp.ne.s32.totalorder %s60, %s61
      %p73 = scmp.eq.s32.totalorder %s23, 3
      %p74 = por %p72, %p73
      %p76 = scmp.ne.s32.totalorder %s61, %s75
      %p77 = scmp.eq.s32.totalorder %s23, 0
      %p78 = por %p76, %p77
      %s80 = sadd.s32 %s79, 1
      %p83 = scmp.eq.s32.totalorder %s17, 3
      %p84 = scmp.ne.s32.totalorder %s79, %s81
      %p85 = scmp.eq.s32.totalorder %s17, 0
      %p86 = por %p84, %p85
      %p87 = scmp.ne.s32.totalorder %s79, %s81
      %p88 = scmp.eq.s32.totalorder %s22, 3
      %p89 = por %p87, %p88
      %p90 = scmp.ne.s32.totalorder %s81, %s82
      %p91 = scmp.eq.s32.totalorder %s22, 0
      %p92 = por %p90, %p91
      %p93 = scmp.ne.s32.totalorder %s81, %s82
      %p94 = scmp.eq.s32.totalorder %s23, 3
      %p95 = por %p93, %p94
      %p97 = scmp.ne.s32.totalorder %s82, %s96
      %p98 = scmp.eq.s32.totalorder %s23, 0
      %p99 = por %p97, %p98
      %s101 = sadd.s32 %s100, 1
      %p104 = scmp.eq.s32.totalorder %s17, 3
      %p105 = scmp.ne.s32.totalorder %s100, %s102
      %p106 = scmp.eq.s32.totalorder %s17, 0
      %p107 = por %p105, %p106
      %p108 = scmp.ne.s32.totalorder %s100, %s102
      %p109 = scmp.eq.s32.totalorder %s22, 3
      %p110 = por %p108, %p109
      %p111 = scmp.ne.s32.totalorder %s102, %s103
      %p112 = scmp.eq.s32.totalorder %s22, 0
      %p113 = por %p111, %p112
      %p114 = scmp.ne.s32.totalorder %s102, %s103
      %p115 = scmp.eq.s32.totalorder %s23, 3
      %p116 = por %p114, %p115
      %p118 = scmp.ne.s32.totalorder %s103, %s117
      %p119 = scmp.eq.s32.totalorder %s23, 0
      %p120 = por %p118, %p119
      %s121 = ssub.s32 %s24, %s36
      %p122 = scmp.eq.s32.totalorder %s121, 0
      %s124 = sadd.s32 %s123, 1
      %s125 = scalar_select %p122, %s123, %s124
      %p128 = pneg %p122
      %p129 = scmp.eq.s32.totalorder %s17, 3
      %p130 = por %p128, %p129
      %p131 = scmp.ne.s32.totalorder %s123, %s126
      %p132 = scmp.eq.s32.totalorder %s17, 0
      %p133 = por %p131, %p132
      %p134 = scmp.ne.s32.totalorder %s123, %s126
      %p135 = scmp.eq.s32.totalorder %s22, 3
      %p136 = por %p134, %p135
      %p137 = scmp.ne.s32.totalorder %s126, %s127
      %p138 = scmp.eq.s32.totalorder %s22, 0
      %p139 = por %p137, %p138
      %p140 = scmp.ne.s32.totalorder %s126, %s127
      %p141 = scmp.eq.s32.totalorder %s23, 3
      %p142 = por %p140, %p141
      %p144 = scmp.ne.s32.totalorder %s127, %s143
      %p145 = scmp.eq.s32.totalorder %s23, 0
      %p146 = por %p144, %p145
      %p147 = scmp.le.s32.totalorder 1, %s17
      %p148 = scmp.lt.s32.totalorder %s17, 5
      %p149 = pnand %p147, %p148
      %p150 = pneg %p149
      // Predicated region
      $region9: #{tpu_custom_call.1} parent=5 // pred_check
        _
      $region10: #{tpu_custom_call.1} parent=5 // pred_check_branch
        %152 = sbr.rel (%p149) target = $region12
      $region11: #{tpu_custom_call.1} parent=5 // pred_region
        %s153 = ssub.s32 %s17, 1
        // Predicated region
        $region13: #{tpu_custom_call.1} parent=11 // pred_check
          %p154 = pneg %p50
        $region14: #{tpu_custom_call.1} parent=11 // pred_check_branch
          %156 = sbr.rel (%p154) target = $region16
        $region15: #{tpu_custom_call.1} parent=11 // pred_region
          %s158 = ssub.s32 64, 64
          %159 = vsyncadd [#allocation7], %s158
          %s161 = sshll.u32 [#allocation6], 4
          %s162 = int_to_ptr.vmem [resolvable:$true] %s161
          %164 = dma.hbm_to_vmem [thread:$0]  %s2, 64, %s162, [#allocation7]
        $region16: #{tpu_custom_call.1} parent=11 // pred_fallthru
          _
        // Predicated region
        $region17: #{tpu_custom_call.1} parent=11 // pred_check
          %p165 = pneg %p71
        $region18: #{tpu_custom_call.1} parent=11 // pred_check_branch
          %167 = sbr.rel (%p165) target = $region20
        $region19: #{tpu_custom_call.1} parent=11 // pred_region
          _
        $region20: #{tpu_custom_call.1} parent=11 // pred_fallthru
          _
        // Predicated region
        $region21: #{tpu_custom_call.1} parent=11 // pred_check
          %p168 = pneg %p92
        $region22: #{tpu_custom_call.1} parent=11 // pred_check_branch
          %170 = sbr.rel (%p168) target = $region24
        $region23: #{tpu_custom_call.1} parent=11 // pred_region
          %s172 = ssub.s32 128, 128
          %173 = vsyncadd [#allocation10], %s172
          %s175 = sshll.u32 [#allocation9], 4
          %s176 = int_to_ptr.vmem [resolvable:$true] %s175
          %178 = dma.hbm_to_vmem [thread:$0]  %s4, 128, %s176, [#allocation10]
        $region24: #{tpu_custom_call.1} parent=11 // pred_fallthru
          _
        // Predicated region
        $region25: #{tpu_custom_call.1} parent=11 // pred_check
          %p179 = pneg %p113
        $region26: #{tpu_custom_call.1} parent=11 // pred_check_branch
          %181 = sbr.rel (%p179) target = $region28
        $region27: #{tpu_custom_call.1} parent=11 // pred_region
          _
        $region28: #{tpu_custom_call.1} parent=11 // pred_fallthru
          _
      $region12: #{tpu_custom_call.1} parent=5 // pred_fallthru
        _
      %p182 = scmp.lt.s32.totalorder %s17, 4
      // Predicated region
      $region29: #{tpu_custom_call.1} parent=5 // pred_check
        %p183 = pneg %p182
      $region30: #{tpu_custom_call.1} parent=5 // pred_check_branch
        %185 = sbr.rel (%p183) target = $region32
      $region31: #{tpu_custom_call.1} parent=5 // pred_region
        _
      $region32: #{tpu_custom_call.1} parent=5 // pred_fallthru
        _
      %p186 = scmp.le.s32.totalorder 1, %s17
      %p187 = scmp.lt.s32.totalorder %s17, 5
      %p188 = pnand %p186, %p187
      %p189 = pneg %p188
      // Predicated region
      $region33: #{tpu_custom_call.1} parent=5 // pred_check
        _
      $region34: #{tpu_custom_call.1} parent=5 // pred_check_branch
        %191 = sbr.rel (%p188) target = $region36
      $region35: #{tpu_custom_call.1} parent=5 // pred_region
        %s192 = ssub.s32 %s17, 1
        // Predicated region
        $region37: #{tpu_custom_call.1} parent=35 // pred_check
          %p193 = pneg %p50
        $region38: #{tpu_custom_call.1} parent=35 // pred_check_branch
          %195 = sbr.rel (%p193) target = $region40
        $region39: #{tpu_custom_call.1} parent=35 // pred_region
          %196 = dma.done [#allocation7], 64
        $region40: #{tpu_custom_call.1} parent=35 // pred_fallthru
          _
        // Predicated region
        $region41: #{tpu_custom_call.1} parent=35 // pred_check
          %p197 = pneg %p92
        $region42: #{tpu_custom_call.1} parent=35 // pred_check_branch
          %199 = sbr.rel (%p197) target = $region44
        $region43: #{tpu_custom_call.1} parent=35 // pred_region
          %200 = dma.done [#allocation10], 128
        $region44: #{tpu_custom_call.1} parent=35 // pred_fallthru
          _
        %p201 = pneg %p50
        %p202 = pneg %p47
        %p203 = pneg %p71
        %p204 = pneg %p68
        %p205 = pneg %p92
        %p206 = pneg %p89
        %p207 = pneg %p113
        %p208 = pneg %p110
        %p209 = pneg %p139
        %p210 = pneg %p136
        %s211 = sand.u32 %s126, 1
        %s212 = scalar_lea.sflag [#allocation8], %s211
        %s213 = sand.u32 %s126, 1
        %s214 = smul.addr %s213, 32
        %s215 = scalar_lea.vmem [#allocation11], %s214
        %s217 = sand.u32 %s27, 1
        %p218 = scmp.eq.s32.totalorder %s27, 0
        // Predicated region
        $region45: #{tpu_custom_call.1} parent=35 // pred_check
          %p219 = pneg %p218
        $region46: #{tpu_custom_call.1} parent=35 // pred_check_branch
          %221 = sbr.rel (%p219) target = $region48
        $region47: #{tpu_custom_call.1} parent=35 // pred_region
          %vm222 = vcmask 7168
          %223 = vst.msk [vmem:[#allocation5] sm:$0xff] %vm222, 0.0
          %s224 = smul.u32 %s27, 256
          %s225 = sshra.s32 %s224, 7
          %s226 = sand.u32 %s224, 127
          %s227 = smul.u32 %s26, 5
          %s228 = sadd.s32 %s225, %s227
          %s229 = smul.addr %s228, 16
          %s230 = scalar_lea.hbm %s0, %s229
          %s231 = smul.u32 %s217, 3
          %s232 = scalar_lea.vmem [#allocation2], %s231
          %s233 = smul.u32 %s217, 2
          %s234 = scalar_lea.sflag [#allocation4], %s233
          // Predicated region
          $region49: #{tpu_custom_call.1} parent=47 // pred_check
            _
          $region50: #{tpu_custom_call.1} parent=47 // pred_check_branch
            %236 = sbr.rel target = $region52
          $region51: #{tpu_custom_call.1} parent=47 // pred_region
            %237 = sst [smem:[#allocation14]] [#allocation13]
            %238 = sst [smem:[#allocation15]] [#allocation12]
          $region52: #{tpu_custom_call.1} parent=47 // pred_fallthru
            _
          %240 = shalt.err (0)
          %s242 = sshll.u32 %s232, 4
          %s243 = int_to_ptr.vmem [resolvable:$true] %s242
          %245 = dma.hbm_to_vmem [thread:$0]  %s230, 48, %s243, %s234
          %s246 = smul.addr %s228, 16
          %s247 = scalar_lea.hbm %s1, %s246
          %s248 = scalar_lea.vmem [#allocation3], %s231
          %s249 = sadd.s32 1, %s233
          %s250 = scalar_lea.sflag [#allocation4], %s249
          // Predicated region
          $region53: #{tpu_custom_call.1} parent=47 // pred_check
            _
          $region54: #{tpu_custom_call.1} parent=47 // pred_check_branch
            %252 = sbr.rel target = $region56
          $region55: #{tpu_custom_call.1} parent=47 // pred_region
            %253 = sst [smem:[#allocation14]] [#allocation17]
            %254 = sst [smem:[#allocation15]] [#allocation16]
          $region56: #{tpu_custom_call.1} parent=47 // pred_fallthru
            _
          %256 = shalt.err (0)
          %s258 = sshll.u32 %s248, 4
          %s259 = int_to_ptr.vmem [resolvable:$true] %s258
          %261 = dma.hbm_to_vmem [thread:$0]  %s247, 48, %s259, %s250
        $region48: #{tpu_custom_call.1} parent=35 // pred_fallthru
          _
        %s262 = sadd.s32 %s27, 1
        %p263 = scmp.lt.s32.totalorder %s262, 2
        // Predicated region
        $region57: #{tpu_custom_call.1} parent=35 // pred_check
          %p264 = pneg %p263
        $region58: #{tpu_custom_call.1} parent=35 // pred_check_branch
          %266 = sbr.rel (%p264) target = $region60
        $region59: #{tpu_custom_call.1} parent=35 // pred_region
          %s267 = ssub.s32 1, %s217
          %s268 = smul.u32 %s262, 256
          %s269 = sshra.s32 %s268, 7
          %s270 = sand.u32 %s268, 127
          %s271 = smul.u32 %s26, 5
          %s272 = sadd.s32 %s269, %s271
          %s273 = smul.addr %s272, 16
          %s274 = scalar_lea.hbm %s0, %s273
          %s275 = smul.u32 %s267, 3
          %s276 = scalar_lea.vmem [#allocation2], %s275
          %s277 = smul.u32 %s267, 2
          %s278 = scalar_lea.sflag [#allocation4], %s277
          // Predicated region
          $region61: #{tpu_custom_call.1} parent=59 // pred_check
            _
          $region62: #{tpu_custom_call.1} parent=59 // pred_check_branch
            %280 = sbr.rel target = $region64
          $region63: #{tpu_custom_call.1} parent=59 // pred_region
            %281 = sst [smem:[#allocation14]] [#allocation19]
            %282 = sst [smem:[#allocation15]] [#allocation18]
          $region64: #{tpu_custom_call.1} parent=59 // pred_fallthru
            _
          %284 = shalt.err (0)
          %s286 = sshll.u32 %s276, 4
          %s287 = int_to_ptr.vmem [resolvable:$true] %s286
          %289 = dma.hbm_to_vmem [thread:$0]  %s274, 48, %s287, %s278
          %s290 = smul.addr %s272, 16
          %s291 = scalar_lea.hbm %s1, %s290
          %s292 = scalar_lea.vmem [#allocation3], %s275
          %s293 = sadd.s32 1, %s277
          %s294 = scalar_lea.sflag [#allocation4], %s293
          // Predicated region
          $region65: #{tpu_custom_call.1} parent=59 // pred_check
            _
          $region66: #{tpu_custom_call.1} parent=59 // pred_check_branch
            %296 = sbr.rel target = $region68
          $region67: #{tpu_custom_call.1} parent=59 // pred_region
            %297 = sst [smem:[#allocation14]] [#allocation21]
            %298 = sst [smem:[#allocation15]] [#allocation20]
          $region68: #{tpu_custom_call.1} parent=59 // pred_fallthru
            _
          %300 = shalt.err (0)
          %s302 = sshll.u32 %s292, 4
          %s303 = int_to_ptr.vmem [resolvable:$true] %s302
          %305 = dma.hbm_to_vmem [thread:$0]  %s291, 48, %s303, %s294
        $region60: #{tpu_custom_call.1} parent=35 // pred_fallthru
          _
        %s306 = smul.u32 %s217, 3
        %s307 = scalar_lea.vmem [#allocation2], %s306
        %s308 = smul.u32 %s217, 2
        %s309 = scalar_lea.sflag [#allocation4], %s308
        %s310 = smul.u32 1, 3
        %s311 = sshll.u32 %s310, 4
        %312 = dma.done %s309, %s311
        %s313 = scalar_lea.vmem [#allocation3], %s306
        %s314 = sadd.s32 1, %s308
        %s315 = scalar_lea.sflag [#allocation4], %s314
        %s316 = sshll.u32 %s310, 4
        %317 = dma.done %s315, %s316
        %v318 = vld [vmem:[#allocation9] sm:$0xff]
        %s319 = smul.u32 %s27, 8
        %s320 = scvt.s32.f32 %s319
        %v321 = vld [vmem:[%s307] sm:$0x7]
        %v324 = vunpack.c.l.s4 1966171168
        %v325 = vunpack.c.0.s8 %v324
        %v326 = vlaneseq
        %v327 = vshrl.u32 %v326, 7
        %v328 = vsub.s32 %v325, %v327
        %v329 = vrot.slane %v321, %v328
        %v330 = vcombine.high %v329, %v329
        %v332 = vunpack.c.l.s4 1966171168
        %v333 = vunpack.c.0.s8 %v332
        %v334 = vlaneseq
        %v335 = vshrl.u32 %v334, 7
        %v336 = vsub.s32 %v333, %v335
        %v337 = vrot.slane %v329, %v336
        %v339 = vunpack.c.l.s4 1966171168
        %v340 = vunpack.c.0.s8 %v339
        %v341 = vlaneseq
        %v342 = vshrl.u32 %v341, 7
        %v343 = vsub.s32 %v340, %v342
        %v344 = vrot.slane %v330, %v343
        %v345 = vcombine.high %v337, %v337
        %v346 = vcombine.low %v321, %v321
        %v348 = vunpack.c.l.s4 1966171168
        %v349 = vunpack.c.0.s8 %v348
        %v350 = vlaneseq
        %v351 = vshrl.u32 %v350, 7
        %v352 = vsub.s32 %v349, %v351
        %v353 = vrot.slane %v346, %v352
        %v354 = vcombine.high %v353, %v353
        %v356 = vunpack.c.l.s4 1966171168
        %v357 = vunpack.c.0.s8 %v356
        %v358 = vlaneseq
        %v359 = vshrl.u32 %v358, 7
        %v360 = vsub.s32 %v357, %v359
        %v361 = vrot.slane %v353, %v360
        %v363 = vunpack.c.l.s4 1966171168
        %v364 = vunpack.c.0.s8 %v363
        %v365 = vlaneseq
        %v366 = vshrl.u32 %v365, 7
        %v367 = vsub.s32 %v364, %v366
        %v368 = vrot.slane %v354, %v367
        %v369 = vcombine.high %v361, %v361
        %370 = vrot.lane.b32.xlu0 %v361, 127
        %v371 = vpop.permute.xlu0 %370
        %372 = vrot.lane.b32.xlu0 %v368, 127
        %v373 = vpop.permute.xlu0 %372
        %374 = vrot.lane.b32.xlu0 %v369, 127
        %v375 = vpop.permute.xlu0 %374
        %vm376 = vcmask 1039360
        %v377 = vsel %vm376, %v371, %v373
        %v378 = vsel %vm376, %v373, %v375
        %v379 = vcombine.low %v329, %v329
        %v381 = vunpack.c.l.s4 1966171168
        %v382 = vunpack.c.0.s8 %v381
        %v383 = vlaneseq
        %v384 = vshrl.u32 %v383, 7
        %v385 = vsub.s32 %v382, %v384
        %v386 = vrot.slane %v379, %v385
        %v387 = vcombine.high %v386, %v386
        %388 = vrot.lane.b32.xlu0 %v386, 126
        %v389 = vpop.permute.xlu0 %388
        %390 = vrot.lane.b32.xlu0 %v337, 126
        %v391 = vpop.permute.xlu0 %390
        %392 = vrot.lane.b32.xlu0 %v387, 126
        %v393 = vpop.permute.xlu0 %392
        %vm394 = vcmask 1031168
        %v395 = vsel %vm394, %v389, %v391
        %v396 = vsel %vm394, %v391, %v393
        %v397 = vcombine.low %v353, %v353
        %v399 = vunpack.c.l.s4 1966171168
        %v400 = vunpack.c.0.s8 %v399
        %v401 = vlaneseq
        %v402 = vshrl.u32 %v401, 7
        %v403 = vsub.s32 %v400, %v402
        %v404 = vrot.slane %v397, %v403
        %v405 = vcombine.high %v404, %v404
        %406 = vrot.lane.b32.xlu0 %v404, 96
        %v407 = vpop.permute.xlu0 %406
        %408 = vrot.lane.b32.xlu0 %v361, 96
        %v409 = vpop.permute.xlu0 %408
        %410 = vrot.lane.b32.xlu0 %v405, 96
        %v411 = vpop.permute.xlu0 %410
        %vm412 = vcmask 785408
        %v413 = vsel %vm412, %v407, %v409
        %v414 = vsel %vm412, %v409, %v411
        %v415 = vcombine.low %v337, %v337
        %v416 = vcombine.low %v344, %v344
        %417 = vrot.lane.b32.xlu0 %v415, 95
        %v418 = vpop.permute.xlu0 %417
        %419 = vrot.lane.b32.xlu0 %v416, 95
        %v420 = vpop.permute.xlu0 %419
        %421 = vrot.lane.b32.xlu0 %v337, 95
        %v422 = vpop.permute.xlu0 %421
        %vm423 = vcmask 777216
        %v424 = vsel %vm423, %v418, %v420
        %v425 = vsel %vm423, %v420, %v422
        %v426 = vcombine.low %v361, %v361
        %v427 = vcombine.low %v368, %v368
        %428 = vrot.lane.b32.xlu0 %v426, 94
        %v429 = vpop.permute.xlu0 %428
        %430 = vrot.lane.b32.xlu0 %v427, 94
        %v431 = vpop.permute.xlu0 %430
        %432 = vrot.lane.b32.xlu0 %v361, 94
        %v433 = vpop.permute.xlu0 %432
        %vm434 = vcmask 769024
        %v435 = vsel %vm434, %v429, %v431
        %v436 = vsel %vm434, %v431, %v433
        %v437 = vcombine.low %v386, %v386
        %438 = vrot.lane.b32.xlu0 %v437, 64
        %v439 = vpop.permute.xlu0 %438
        %440 = vrot.lane.b32.xlu0 %v415, 64
        %v441 = vpop.permute.xlu0 %440
        %442 = vrot.lane.b32.xlu0 %v386, 64
        %v443 = vpop.permute.xlu0 %442
        %vm444 = vcmask 523264
        %v445 = vsel %vm444, %v439, %v441
        %v446 = vsel %vm444, %v441, %v443
        %v447 = vcombine.low %v404, %v404
        %448 = vrot.lane.b32.xlu0 %v447, 63
        %v449 = vpop.permute.xlu0 %448
        %450 = vrot.lane.b32.xlu0 %v426, 63
        %v451 = vpop.permute.xlu0 %450
        %452 = vrot.lane.b32.xlu0 %v404, 63
        %v453 = vpop.permute.xlu0 %452
        %vm454 = vcmask 515072
        %v455 = vsel %vm454, %v449, %v451
        %v456 = vsel %vm454, %v451, %v453
        %457 = vrot.lane.b32.xlu0 %v337, 62
        %v458 = vpop.permute.xlu0 %457
        %459 = vrot.lane.b32.xlu0 %v344, 62
        %v460 = vpop.permute.xlu0 %459
        %461 = vrot.lane.b32.xlu0 %v345, 62
        %v462 = vpop.permute.xlu0 %461
        %vm463 = vcmask 506880
        %v464 = vsel %vm463, %v458, %v460
        %v465 = vsel %vm463, %v460, %v462
        %vm466 = vcmask 1040384
        %v469 = vsel %vm466, %v337, %v377
        %v472 = vsel %vm466, %v344, %v378
        %v475 = vsel %vm466, %v345, %v375
        %vm476 = vcmask 1041408
        %v478 = vsel %vm476, %v469, %v395
        %v480 = vsel %vm476, %v472, %v396
        %v482 = vsel %vm476, %v475, %v393
        %vm483 = vcmask 1042432
        %v485 = vsel %vm483, %v478, %v413
        %v487 = vsel %vm483, %v480, %v414
        %v489 = vsel %vm483, %v482, %v411
        %vm490 = vcmask 1043456
        %v492 = vsel %vm490, %v485, %v424
        %v494 = vsel %vm490, %v487, %v425
        %v496 = vsel %vm490, %v489, %v422
        %vm497 = vcmask 1044480
        %v499 = vsel %vm497, %v492, %v435
        %v501 = vsel %vm497, %v494, %v436
        %v503 = vsel %vm497, %v496, %v433
        %vm504 = vcmask 1045504
        %v506 = vsel %vm504, %v499, %v445
        %v508 = vsel %vm504, %v501, %v446
        %v510 = vsel %vm504, %v503, %v443
        %vm511 = vcmask 1046528
        %v513 = vsel %vm511, %v506, %v455
        %v515 = vsel %vm511, %v508, %v456
        %v517 = vsel %vm511, %v510, %v453
        %v518 = vld [vmem:[%s313] sm:$0x7]
        %v521 = vunpack.c.l.s4 1966171168
        %v522 = vunpack.c.0.s8 %v521
        %v523 = vlaneseq
        %v524 = vshrl.u32 %v523, 7
        %v525 = vsub.s32 %v522, %v524
        %v526 = vrot.slane %v518, %v525
        %v527 = vcombine.high %v526, %v526
        %v529 = vunpack.c.l.s4 1966171168
        %v530 = vunpack.c.0.s8 %v529
        %v531 = vlaneseq
        %v532 = vshrl.u32 %v531, 7
        %v533 = vsub.s32 %v530, %v532
        %v534 = vrot.slane %v526, %v533
        %v536 = vunpack.c.l.s4 1966171168
        %v537 = vunpack.c.0.s8 %v536
        %v538 = vlaneseq
        %v539 = vshrl.u32 %v538, 7
        %v540 = vsub.s32 %v537, %v539
        %v541 = vrot.slane %v527, %v540
        %v542 = vcombine.high %v534, %v534
        %v543 = vcombine.low %v518, %v518
        %v545 = vunpack.c.l.s4 1966171168
        %v546 = vunpack.c.0.s8 %v545
        %v547 = vlaneseq
        %v548 = vshrl.u32 %v547, 7
        %v549 = vsub.s32 %v546, %v548
        %v550 = vrot.slane %v543, %v549
        %v551 = vcombine.high %v550, %v550
        %v553 = vunpack.c.l.s4 1966171168
        %v554 = vunpack.c.0.s8 %v553
        %v555 = vlaneseq
        %v556 = vshrl.u32 %v555, 7
        %v557 = vsub.s32 %v554, %v556
        %v558 = vrot.slane %v550, %v557
        %v560 = vunpack.c.l.s4 1966171168
        %v561 = vunpack.c.0.s8 %v560
        %v562 = vlaneseq
        %v563 = vshrl.u32 %v562, 7
        %v564 = vsub.s32 %v561, %v563
        %v565 = vrot.slane %v551, %v564
        %v566 = vcombine.high %v558, %v558
        %567 = vrot.lane.b32.xlu0 %v558, 127
        %v568 = vpop.permute.xlu0 %567
        %569 = vrot.lane.b32.xlu0 %v565, 127
        %v570 = vpop.permute.xlu0 %569
        %571 = vrot.lane.b32.xlu0 %v566, 127
        %v572 = vpop.permute.xlu0 %571
        %v573 = vsel %vm376, %v568, %v570
        %v574 = vsel %vm376, %v570, %v572
        %v575 = vcombine.low %v526, %v526
        %v577 = vunpack.c.l.s4 1966171168
        %v578 = vunpack.c.0.s8 %v577
        %v579 = vlaneseq
        %v580 = vshrl.u32 %v579, 7
        %v581 = vsub.s32 %v578, %v580
        %v582 = vrot.slane %v575, %v581
        %v583 = vcombine.high %v582, %v582
        %584 = vrot.lane.b32.xlu0 %v582, 126
        %v585 = vpop.permute.xlu0 %584
        %586 = vrot.lane.b32.xlu0 %v534, 126
        %v587 = vpop.permute.xlu0 %586
        %588 = vrot.lane.b32.xlu0 %v583, 126
        %v589 = vpop.permute.xlu0 %588
        %v590 = vsel %vm394, %v585, %v587
        %v591 = vsel %vm394, %v587, %v589
        %v592 = vcombine.low %v550, %v550
        %v594 = vunpack.c.l.s4 1966171168
        %v595 = vunpack.c.0.s8 %v594
        %v596 = vlaneseq
        %v597 = vshrl.u32 %v596, 7
        %v598 = vsub.s32 %v595, %v597
        %v599 = vrot.slane %v592, %v598
        %v600 = vcombine.high %v599, %v599
        %601 = vrot.lane.b32.xlu0 %v599, 96
        %v602 = vpop.permute.xlu0 %601
        %603 = vrot.lane.b32.xlu0 %v558, 96
        %v604 = vpop.permute.xlu0 %603
        %605 = vrot.lane.b32.xlu0 %v600, 96
        %v606 = vpop.permute.xlu0 %605
        %v607 = vsel %vm412, %v602, %v604
        %v608 = vsel %vm412, %v604, %v606
        %v609 = vcombine.low %v534, %v534
        %v610 = vcombine.low %v541, %v541
        %611 = vrot.lane.b32.xlu0 %v609, 95
        %v612 = vpop.permute.xlu0 %611
        %613 = vrot.lane.b32.xlu0 %v610, 95
        %v614 = vpop.permute.xlu0 %613
        %615 = vrot.lane.b32.xlu0 %v534, 95
        %v616 = vpop.permute.xlu0 %615
        %v617 = vsel %vm423, %v612, %v614
        %v618 = vsel %vm423, %v614, %v616
        %v619 = vcombine.low %v558, %v558
        %v620 = vcombine.low %v565, %v565
        %621 = vrot.lane.b32.xlu0 %v619, 94
        %v622 = vpop.permute.xlu0 %621
        %623 = vrot.lane.b32.xlu0 %v620, 94
        %v624 = vpop.permute.xlu0 %623
        %625 = vrot.lane.b32.xlu0 %v558, 94
        %v626 = vpop.permute.xlu0 %625
        %v627 = vsel %vm434, %v622, %v624
        %v628 = vsel %vm434, %v624, %v626
        %v629 = vcombine.low %v582, %v582
        %630 = vrot.lane.b32.xlu0 %v629, 64
        %v631 = vpop.permute.xlu0 %630
        %632 = vrot.lane.b32.xlu0 %v609, 64
        %v633 = vpop.permute.xlu0 %632
        %634 = vrot.lane.b32.xlu0 %v582, 64
        %v635 = vpop.permute.xlu0 %634
        %v636 = vsel %vm444, %v631, %v633
        %v637 = vsel %vm444, %v633, %v635
        %v638 = vcombine.low %v599, %v599
        %639 = vrot.lane.b32.xlu0 %v638, 63
        %v640 = vpop.permute.xlu0 %639
        %641 = vrot.lane.b32.xlu0 %v619, 63
        %v642 = vpop.permute.xlu0 %641
        %643 = vrot.lane.b32.xlu0 %v599, 63
        %v644 = vpop.permute.xlu0 %643
        %v645 = vsel %vm454, %v640, %v642
        %v646 = vsel %vm454, %v642, %v644
        %647 = vrot.lane.b32.xlu0 %v534, 62
        %v648 = vpop.permute.xlu0 %647
        %649 = vrot.lane.b32.xlu0 %v541, 62
        %v650 = vpop.permute.xlu0 %649
        %651 = vrot.lane.b32.xlu0 %v542, 62
        %v652 = vpop.permute.xlu0 %651
        %v653 = vsel %vm463, %v648, %v650
        %v654 = vsel %vm463, %v650, %v652
        %v657 = vsel %vm466, %v534, %v573
        %v660 = vsel %vm466, %v541, %v574
        %v663 = vsel %vm466, %v542, %v572
        %v665 = vsel %vm476, %v657, %v590
        %v667 = vsel %vm476, %v660, %v591
        %v669 = vsel %vm476, %v663, %v589
        %v671 = vsel %vm483, %v665, %v607
        %v673 = vsel %vm483, %v667, %v608
        %v675 = vsel %vm483, %v669, %v606
        %v677 = vsel %vm490, %v671, %v617
        %v679 = vsel %vm490, %v673, %v618
        %v681 = vsel %vm490, %v675, %v616
        %v683 = vsel %vm497, %v677, %v627
        %v685 = vsel %vm497, %v679, %v628
        %v687 = vsel %vm497, %v681, %v626
        %v689 = vsel %vm504, %v683, %v636
        %v691 = vsel %vm504, %v685, %v637
        %v693 = vsel %vm504, %v687, %v635
        %v695 = vsel %vm511, %v689, %v645
        %v697 = vsel %vm511, %v691, %v646
        %v699 = vsel %vm511, %v693, %v644
        %v700 = vld [vmem:[#allocation6] sm:$0xf]
        %v701 = vld [vmem:[%s3] sm:$0xf]
        %705 = vrot.lane.b32.xlu0 %v695, 97
        %v706 = vpop.permute.xlu0 %705
        %707 = vrot.lane.b32.xlu0 %v697, 97
        %v708 = vpop.permute.xlu0 %707
        %709 = vrot.lane.b32.xlu0 %v699, 97
        %v710 = vpop.permute.xlu0 %709
        %711 = vrot.lane.b32.xlu0 %v653, 97
        %v712 = vpop.permute.xlu0 %711
        %713 = vrot.lane.b32.xlu0 %v654, 97
        %v714 = vpop.permute.xlu0 %713
        %715 = vrot.lane.b32.xlu0 %v652, 97
        %v716 = vpop.permute.xlu0 %715
        %vm717 = vcmask 793600
        %v718 = vsel %vm717, %v706, %v708
        %v719 = vsel %vm717, %v708, %v710
        %v720 = vsel %vm717, %v712, %v714
        %v721 = vsel %vm717, %v714, %v716
        %vm724 = vcmask 146432
        %v726 = vsel %vm724, %v701, 0
        %v729 = vsel %vm466, %v720, 0
        %v732 = vsel %vm466, %v721, 0
        %734 = vmatprep.subr.bf16.mxu0 0
        %735 = vmatpush1.bf16.msra.mxu0 0
        %736 = vmatprep.subr.bf16.mxu0 0
        %737 = vmatpush1.bf16.msra.mxu0 0
        %738 = vmatprep.subr.bf16.mxu0 0
        %739 = vmatpush1.bf16.msra.mxu0 0
        %740 = vmatprep.subr.bf16.mxu0 0
        %741 = vmatpush1.bf16.msra.mxu0 0
        %742 = vmatprep.subr.bf16.mxu0 0
        %743 = vmatpush1.bf16.msra.mxu0 0
        %744 = vmatprep.subr.bf16.mxu0 0
        %745 = vmatpush1.bf16.msra.mxu0 0
        %746 = vmatprep.subr.bf16.mxu0 %v732
        %747 = vmatpush1.bf16.msra.mxu0 %v729
        %748 = vmatprep.subr.bf16.mxu0 %v719
        %749 = vmatpush1.bf16.msra.mxu0 %v718
        %750 = vmatprep.subr.bf16.mxu0 0
        %751 = vmatpush2.bf16.msra.mxu0 0
        %752 = vmatprep.subr.bf16.mxu0 0
        %753 = vmatpush2.bf16.msra.mxu0 0
        %754 = vmatprep.subr.bf16.mxu0 0
        %755 = vmatpush2.bf16.msra.mxu0 0
        %756 = vmatprep.subr.bf16.mxu0 0
        %757 = vmatpush2.bf16.msra.mxu0 0
        %758 = vmatprep.subr.bf16.mxu0 0
        %759 = vmatpush2.bf16.msra.mxu0 0
        %760 = vmatprep.subr.bf16.mxu0 0
        %761 = vmatpush2.bf16.msra.mxu0 0
        %762 = vmatprep.subr.bf16.mxu0 0
        %763 = vmatpush2.bf16.msra.mxu0 0
        %764 = vmatprep.subr.bf16.mxu0 0
        %765 = vmatpush2.bf16.msra.mxu0 0
        %766 = vmatprep.mubr.bf16.mxu0 0
        %767 = vmatmul.mubr.bf16.gmra.mxu0 %v726
        %v768 = vpop.f32.mrf.mxu0
        %v769 = vadd.f32 0.0, %v768
        %v770 = vpop.f32.mrf.mxu0
        %v771 = vadd.f32 0.0, %v770
        %v772 = vpop.f32.mrf.mxu0
        %v773 = vpop.f32.mrf.mxu0
        %774 = vdwg.mxu0
        %778 = vrot.lane.b32.xlu0 %v513, 97
        %v779 = vpop.permute.xlu0 %778
        %780 = vrot.lane.b32.xlu0 %v515, 97
        %v781 = vpop.permute.xlu0 %780
        %782 = vrot.lane.b32.xlu0 %v517, 97
        %v783 = vpop.permute.xlu0 %782
        %784 = vrot.lane.b32.xlu0 %v464, 97
        %v785 = vpop.permute.xlu0 %784
        %786 = vrot.lane.b32.xlu0 %v465, 97
        %v787 = vpop.permute.xlu0 %786
        %788 = vrot.lane.b32.xlu0 %v462, 97
        %v789 = vpop.permute.xlu0 %788
        %v790 = vsel %vm717, %v779, %v781
        %v791 = vsel %vm717, %v781, %v783
        %v792 = vsel %vm717, %v785, %v787
        %v793 = vsel %vm717, %v787, %v789
        %v797 = vsel %vm724, %v700, 0
        %v800 = vsel %vm466, %v792, 0
        %v803 = vsel %vm466, %v793, 0
        %805 = vmatprep.subr.bf16.mxu0 0
        %806 = vmatpush1.bf16.msra.mxu0 0
        %807 = vmatprep.subr.bf16.mxu0 0
        %808 = vmatpush1.bf16.msra.mxu0 0
        %809 = vmatprep.subr.bf16.mxu0 0
        %810 = vmatpush1.bf16.msra.mxu0 0
        %811 = vmatprep.subr.bf16.mxu0 0
        %812 = vmatpush1.bf16.msra.mxu0 0
        %813 = vmatprep.subr.bf16.mxu0 0
        %814 = vmatpush1.bf16.msra.mxu0 0
        %815 = vmatprep.subr.bf16.mxu0 0
        %816 = vmatpush1.bf16.msra.mxu0 0
        %817 = vmatprep.subr.bf16.mxu0 %v803
        %818 = vmatpush1.bf16.msra.mxu0 %v800
        %819 = vmatprep.subr.bf16.mxu0 %v791
        %820 = vmatpush1.bf16.msra.mxu0 %v790
        %821 = vmatprep.subr.bf16.mxu0 0
        %822 = vmatpush2.bf16.msra.mxu0 0
        %823 = vmatprep.subr.bf16.mxu0 0
        %824 = vmatpush2.bf16.msra.mxu0 0
        %825 = vmatprep.subr.bf16.mxu0 0
        %826 = vmatpush2.bf16.msra.mxu0 0
        %827 = vmatprep.subr.bf16.mxu0 0
        %828 = vmatpush2.bf16.msra.mxu0 0
        %829 = vmatprep.subr.bf16.mxu0 0
        %830 = vmatpush2.bf16.msra.mxu0 0
        %831 = vmatprep.subr.bf16.mxu0 0
        %832 = vmatpush2.bf16.msra.mxu0 0
        %833 = vmatprep.subr.bf16.mxu0 0
        %834 = vmatpush2.bf16.msra.mxu0 0
        %835 = vmatprep.subr.bf16.mxu0 0
        %836 = vmatpush2.bf16.msra.mxu0 0
        %837 = vmatprep.mubr.bf16.mxu0 0
        %838 = vmatmul.mubr.bf16.gmra.mxu0 %v797
        %v839 = vpop.f32.mrf.mxu0
        %v840 = vadd.f32 %v769, %v839
        %v841 = vpop.f32.mrf.mxu0
        %v842 = vadd.f32 %v771, %v841
        %v843 = vpop.f32.mrf.mxu0
        %v844 = vpop.f32.mrf.mxu0
        %845 = vdwg.mxu0
        %847 = vset.pattern.permute.xlu0 0
        %848 = vperm.xlu0 %847, %v318
        %v849 = vpop.permute.xlu0 %848
        %v851 = vmul.f32 %v840, %v849
        %v852 = vmul.f32 %v842, %v849
        %853 = vset.pattern.permute.xlu0 1
        %854 = vperm.xlu0 %853, %v318
        %v855 = vpop.permute.xlu0 %854
        %v857 = vadd.f32 %v851, %v855
        %v858 = vadd.f32 %v852, %v855
        %v859 = vmax.f32 %v857, 0.0
        %v860 = vmax.f32 %v858, 0.0
        %s861 = smul.u32 %s27, 2
        %s862 = smul.addr %s861, 8
        %s863 = scalar_lea.vmem %s215, %s862 [#allocation11]
        %864 = vst [vmem:[%s863] sm:$0xff] %v859
        %865 = vst [vmem:[%s863 + $0x8] sm:$0xff] %v860
        %v866 = vlaneseq
        %v867 = vand.u32 %v866, 127
        %v868 = vadd.s32 %v867, 128
        %v869 = vcvt.s32.f32 %v867
        %v870 = vcvt.s32.f32 %v868
        %v871 = vmul.f32 %v869, 0.03125
        %v872 = vmul.f32 %v870, 0.03125
        %v873 = vfloor.f32 %v871
        %v874 = vfloor.f32 %v872
        %v875 = vmul.f32 %v873, 32.0
        %v876 = vmul.f32 %v874, 32.0
        %v877 = vsub.f32 %v869, %v875
        %v878 = vsub.f32 %v870, %v876
        %v879 = vstv %s320
        %v880 = vadd.f32 %v873, %v879
        %v881 = vadd.f32 %v874, %v879
        %vm882 = vcmp.ge.f32.partialorder %v877, 0.5
        %vm883 = vcmp.ge.f32.partialorder %v878, 0.5
        %vm884 = vcmp.le.f32.partialorder %v877, 16.5
        %vm885 = vcmp.le.f32.partialorder %v878, 16.5
        %vm886 = vmand %vm882, %vm884
        %vm887 = vmand %vm883, %vm885
        %vm888 = vcmp.le.f32.partialorder %v880, 15.5
        %vm889 = vcmp.le.f32.partialorder %v881, 15.5
        %vm890 = vmand %vm886, %vm888
        %vm891 = vmand %vm887, %vm889
        %v892 = vld [vmem:[#allocation5] sm:$0xff]
        %v893 = vsel %vm890, 1, 0
        %v894 = vsel %vm891, 1, 0
        %v895 = vcvt.s32.f32 %v893
        %v896 = vcvt.s32.f32 %v894
        %v897 = vmul.f32 %v859, %v895
        %v898 = vmul.f32 %v860, %v896
        %v899 = vadd.f32 %v897, %v898
        %900 = vadd.xlane.f32.xlu0 %v899
        %v901 = vpop.xlane.xlu0 %900
        %v902 = vadd.f32 %v892, %v901
        %vm903 = vcmask 7168
        %904 = vst.msk [vmem:[#allocation5] sm:$0xff] %vm903, %v902
        %p905 = scmp.eq.s32.totalorder %s27, 1
        // Predicated region
        $region69: #{tpu_custom_call.1} parent=35 // pred_check
          %p906 = pneg %p905
        $region70: #{tpu_custom_call.1} parent=35 // pred_check_branch
          %908 = sbr.rel (%p906) target = $region72
        $region71: #{tpu_custom_call.1} parent=35 // pred_region
          %v909 = vld [vmem:[#allocation5] sm:$0xff]
          %v910 = vmul.f32 %v909, 0.00390625
          %v911 = vld [vmem:[#allocation9] sm:$0xff]
          %v912 = vld [vmem:[%s5] sm:$0x1]
          %914 = vset.pattern.permute.xlu0 0
          %915 = vperm.xlu0 %914, %v910
          %v916 = vpop.permute.xlu0 %915
          %v918 = vmul.f32 %v911, %v916
          %vm919 = vcmask 89112
          %v920 = vsel %vm919, %v918, 0.0
          %v921 = vrot.slane %v920, 4
          %v922 = vadd.f32 %v920, %v921
          %v923 = vrot.slane %v922, 2
          %v924 = vadd.f32 %v922, %v923
          %v925 = vrot.slane %v924, 1
          %v926 = vadd.f32 %v924, %v925
          %v928 = vlaneseq
          %v929 = vshrl.u32 %v928, 7
          %v930 = vsub.s32 0, %v929
          %v931 = vrot.slane %v912, %v930
          %932 = vrot.lane.b32.xlu0 %v931, 3
          %v933 = vpop.permute.xlu0 %932
          %v935 = vadd.f32 %v926, %v933
          %v936 = vmax.f32 %v935, 0.0
          %v937 = vlaneseq
          %v938 = vshrl.u32 %v937, 7
          %v939 = vsub.s32 0, %v938
          %v940 = vrot.slane %v936, %v939
          %942 = vrot.lane.b32.xlu0 %v940, 8
          %v943 = vpop.permute.xlu0 %942
          %v945 = vmul.f32 %v911, %v943
          %947 = vrot.lane.b32.xlu0 %v945, 117
          %v948 = vpop.permute.xlu0 %947
          %vm950 = vcmask 64512
          %v951 = vsel %vm950, %v948, 0.0
          %952 = vadd.xlane.f32.xlu0 %v951
          %v953 = vpop.xlane.xlu0 %952
          %v954 = vadd.f32 %v953, %v911
          %v955 = vxor.u32 %v954, 2147483648
          %v956 = vmul.f32 %v955, 1.442695
          %v957 = vpow.pop %v956
          %v958 = vadd.f32 %v957, 1.0
          %v959 = vrcp.pop %v958
          %v960 = vmul.f32 1.0, %v959
          %v961 = vadd.f32 %v960, 1.0
          loop: start=0, step=1, limit=2
          $region73: #{tpu_custom_call.1} parent=71 // loop_pre_header
            _
          $region74: #{tpu_custom_call.1} parent=71 // loop_header
            %s963 = sphi 0, %s967
            %p964 = scmp.ge.s32.totalorder %s963, 2
          $region75: #{tpu_custom_call.1} parent=71 // loop_header_branch
            %966 = sbr.rel (%p964) target = $region79
          $region76: #{tpu_custom_call.1} parent=71 // loop_body
            %s968 = smul.u32 %s963, 2
            %s969 = smul.addr %s968, 8
            %s970 = scalar_lea.vmem %s215, %s969 [#allocation11]
            %v971 = vld [vmem:[%s970] sm:$0xff]
            %v972 = vld [vmem:[%s970 + $0x8] sm:$0xff]
            %974 = vset.pattern.permute.xlu0 2
            %975 = vperm.xlu0 %974, %v961
            %v976 = vpop.permute.xlu0 %975
            %v978 = vmul.f32 %v971, %v976
            %v979 = vmul.f32 %v972, %v976
            %980 = vst [vmem:[%s970] sm:$0xff] %v978
            %981 = vst [vmem:[%s970 + $0x8] sm:$0xff] %v979
          $region77: #{tpu_custom_call.1} parent=71 // loop_footer
            %s967 = sadd.s32 1, %s963
          $region78: #{tpu_custom_call.1} parent=71 // loop_footer_branch
            %962 = sbr.rel target = $region74
          $region79: #{tpu_custom_call.1} parent=71 // loop_exit
            _
        $region72: #{tpu_custom_call.1} parent=35 // pred_fallthru
          _
        %s982 = sand.u32 %s126, 1
        %s983 = scalar_lea.sflag [#allocation8], %s982
        %s984 = sand.u32 %s126, 1
        %s985 = smul.addr %s984, 32
        %s986 = scalar_lea.vmem [#allocation11], %s985
        // Predicated region
        $region80: #{tpu_custom_call.1} parent=35 // pred_check
          %p987 = pneg %p136
        $region81: #{tpu_custom_call.1} parent=35 // pred_check_branch
          %989 = sbr.rel (%p987) target = $region83
        $region82: #{tpu_custom_call.1} parent=35 // pred_region
          %s991 = ssub.s32 512, 512
          %992 = vsyncadd %s983, %s991
          %s993 = smul.addr %s26, 4
          %s994 = smul.addr %s993, 128
          %s995 = scalar_lea.hbm %s6, %s994
          %s996 = sshll.u32 %s986, 4
          %s997 = int_to_ptr.vmem [resolvable:$true] %s996
          %1002 = dma.vmem_to_hbm [thread:$0]  %s997, 512, %s995, %s983, 256, 256, 16
        $region83: #{tpu_custom_call.1} parent=35 // pred_fallthru
          _
      $region36: #{tpu_custom_call.1} parent=5 // pred_fallthru
        _
      %p1003 = scmp.le.s32.totalorder 2, %s17
      // Predicated region
      $region84: #{tpu_custom_call.1} parent=5 // pred_check
        %p1004 = pneg %p1003
      $region85: #{tpu_custom_call.1} parent=5 // pred_check_branch
        %1006 = sbr.rel (%p1004) target = $region87
      $region86: #{tpu_custom_call.1} parent=5 // pred_region
        %s1007 = ssub.s32 %s17, 2
        // Predicated region
        $region88: #{tpu_custom_call.1} parent=86 // pred_check
          %p1008 = pneg %p142
        $region89: #{tpu_custom_call.1} parent=86 // pred_check_branch
          %1010 = sbr.rel (%p1008) target = $region91
        $region90: #{tpu_custom_call.1} parent=86 // pred_region
          %s1011 = sand.u32 %s127, 1
          %s1012 = scalar_lea.sflag [#allocation8], %s1011
          %s1013 = sand.u32 %s127, 1
          %s1014 = smul.addr %s1013, 32
          %s1015 = scalar_lea.vmem [#allocation11], %s1014
          %1016 = dma.done %s1012, 512
        $region91: #{tpu_custom_call.1} parent=86 // pred_fallthru
          _
      $region87: #{tpu_custom_call.1} parent=5 // pred_fallthru
        _
    $region6: #{tpu_custom_call.1} parent=1 // loop_footer
      %s21 = sadd.s32 1, %s17
    $region7: #{tpu_custom_call.1} parent=1 // loop_footer_branch
      %16 = sbr.rel target = $region3
    $region8: #{tpu_custom_call.1} parent=1 // loop_exit
      _
    %1017 = vsyncpa [#allocation7], 1
    %s1018 = scalar_lea.sflag [#allocation7], 1
    %1019 = vsyncpa %s1018, 1
    %1020 = vsyncpa [#allocation10], 1
    %1021 = vsyncpa [#allocation8], 1
    %s1022 = scalar_lea.sflag [#allocation8], 1
    %1023 = vsyncpa %s1022, 1
  %1024 = vsyncmov [#allocation4]
  %s1025 = vpop.sfrf %1024
  %p1026 = scmp.eq.s32.totalorder %s1025, 0
  %p1027 = pneg %p1026
  %1029 = shalt.err (%p1027)
  %s1030 = scalar_lea.sflag [#allocation4], 1
  %1031 = vsyncmov %s1030
  %s1032 = vpop.sfrf %1031
  %p1033 = scmp.eq.s32.totalorder %s1032, 0
  %p1034 = pneg %p1033
  %1036 = shalt.err (%p1034)
  %s1037 = scalar_lea.sflag [#allocation4], 2
  %1038 = vsyncmov %s1037
  %s1039 = vpop.sfrf %1038
  %p1040 = scmp.eq.s32.totalorder %s1039, 0
  %p1041 = pneg %p1040
  %1043 = shalt.err (%p1041)
  %s1044 = scalar_lea.sflag [#allocation4], 3
  %1045 = vsyncmov %s1044
  %s1046 = vpop.sfrf %1045
  %p1047 = scmp.eq.s32.totalorder %s1046, 0
  %p1048 = pneg %p1047
  %1050 = shalt.err (%p1048)

</llo_original>
